<compile_context>
chip_gen: v7x
topology: tpu7x:2x2x1
jax: 0.10.0
libtpu: 0.0.40
codegen_flags: <defaults>
</compile_context>

<pallas_src>
import math
from functools import partial

import jax
import jax.numpy as jnp
from jax.experimental import pallas as pl
from jax.experimental.pallas import tpu as pltpu


# ----------------------------------------------------------------------------
# Fused kernel
# ----------------------------------------------------------------------------
#
# Packed layouts (built once at init time, outside the kernel):
#   gate columns (8H): [ i_f | i_b | f_f | f_b | o_f | o_b | g_f | g_b ]
#   w_ih : (2*D, 8H)  rows 0:D feed forward-gate cols (from x_s),
#                     rows D:2D feed backward-gate cols (from x_{T-1-s}).
#   w_hh : (2H, 8H)   block-diagonal: rows 0:H = W_hh_f^T -> fwd cols,
#                     rows H:2H = W_hh_b^T -> bwd cols.
#   bias : (1, 8H)    b_ih + b_hh per direction, same column order.
#   input: (T*B, 2*D) row block s = [ x_s | x_{T-1-s} ]  (time-major).
#
# In the merged time loop, step s advances the forward chain at time s and the
# backward chain at time T-1-s simultaneously; h/c are (B, 2H) = [fwd | bwd].

def fused_bilstm_fc_kernel(x_ref, *refs, T, B, H, num_layers):
    layer_refs = refs[:3 * num_layers]
    fcw_ref = refs[3 * num_layers]
    fcb_ref = refs[3 * num_layers + 1]
    out_ref = refs[3 * num_layers + 2]

    # (T*B, 2*D0): row block s = [x_s | x_{T-1-s}].
    seq = x_ref[...]

    for l in range(num_layers):
        wih = layer_refs[3 * l][...]        # (2*D_l, 8H)
        whh = layer_refs[3 * l + 1][...]    # (2H, 8H) block-diagonal
        bias = layer_refs[3 * l + 2][...]   # (1, 8H)

        # Hoisted, step-aligned input projection for BOTH directions and ALL
        # time steps: one MXU matmul, bias folded in.  Kept in vregs.
        gin = jnp.dot(seq, wih, preferred_element_type=jnp.float32) + bias

        h = jnp.zeros((B, 2 * H), jnp.float32)   # [h_f(s) | h_b(T-1-s)]
        c = jnp.zeros((B, 2 * H), jnp.float32)
        hs = []
        for s in range(T):
            gates = gin[s * B:(s + 1) * B, :] + jnp.dot(
                h, whh, preferred_element_type=jnp.float32)         # (B, 8H)
            ifo = jax.nn.sigmoid(gates[:, 0:6 * H])                 # i|f|o packed
            g = jnp.tanh(gates[:, 6 * H:8 * H])                     # g packed
            c = ifo[:, 2 * H:4 * H] * c + ifo[:, 0:2 * H] * g
            h = ifo[:, 4 * H:6 * H] * jnp.tanh(c)
            hs.append(h)

        if l == num_layers - 1:
            # Only out[:, -1, :] = [h_f(T-1) | h_b(T-1)] feeds the FC head.
            feat = jnp.concatenate([hs[T - 1][:, 0:H], hs[0][:, H:2 * H]],
                                   axis=1)                           # (B, 2H)
            out_ref[...] = (
                jnp.dot(feat, fcw_ref[...], preferred_element_type=jnp.float32)
                + fcb_ref[...]).astype(out_ref.dtype)
        else:
            # Assemble the next layer's doubled, step-aligned input ONCE after
            # the loop (no per-step stores / concats on the serial chain).
            a = jnp.concatenate(hs, axis=0)         # block s = [h_f(s)     | h_b(T-1-s)]
            ar = jnp.concatenate(hs[::-1], axis=0)  # block s = [h_f(T-1-s) | h_b(s)    ]
            seq = jnp.concatenate(
                [a[:, 0:H], ar[:, H:2 * H],         # [h_f(s)     | h_b(s)    ]
                 ar[:, 0:H], a[:, H:2 * H]],        # [h_f(T-1-s) | h_b(T-1-s)]
                axis=1)                             # (T*B, 4H)


# ----------------------------------------------------------------------------
# Wrapper
# ----------------------------------------------------------------------------

def lstm_model_forward(x, kparams):
    """x: (B, T, input_size) batch-first, like PyTorch forward(input)."""
    B, T, D = x.shape
    num_layers = len(kparams["layers"])
    H = kparams["layers"][0]["whh"].shape[0] // 2
    O = kparams["fc_w"].shape[1]

    # Batch-first -> time-major, plus the time-reversed copy alongside so the
    # kernel's hoisted projection is already step-aligned for both directions.
    xt = jnp.transpose(x, (1, 0, 2)).astype(jnp.float32)            # (T, B, D)
    seq0 = jnp.concatenate([xt, xt[::-1]], axis=-1).reshape(T * B, 2 * D)

    flat = []
    for lp in kparams["layers"]:
        flat += [lp["wih"], lp["whh"], lp["bias"]]
    flat += [kparams["fc_w"], kparams["fc_b"]]

    return pl.pallas_call(
        partial(fused_bilstm_fc_kernel, T=T, B=B, H=H, num_layers=num_layers),
        out_shape=jax.ShapeDtypeStruct((B, O), jnp.float32),
        compiler_params=pltpu.CompilerParams(vmem_limit_bytes=32 * 1024 * 1024),
    )(seq0, *flat)


lstm_model_forward_jit = jax.jit(lstm_model_forward)


# ----------------------------------------------------------------------------
# Parameter init (PyTorch layout) + repacking to the kernel layout
# ----------------------------------------------------------------------------

def init_raw_params(key, input_size, hidden_size, output_size, num_layers):
    """PyTorch-layout params: per layer/direction W_ih (4H,D), W_hh (4H,H),
    b_ih, b_hh (4H,); Linear (O,2H), (O,).  uniform(-1/sqrt(H), 1/sqrt(H))."""
    H = hidden_size
    k = 1.0 / math.sqrt(H)
    raw = {"lstm": []}
    for layer in range(num_layers):
        d_in = input_size if layer == 0 else 2 * H
        lp = {}
        for d in ("f", "b"):
            key, k1, k2, k3, k4 = jax.random.split(key, 5)
            lp[d] = {
                "w_ih": jax.random.uniform(k1, (4 * H, d_in), minval=-k,
                                           maxval=k, dtype=jnp.float32),
                "w_hh": jax.random.uniform(k2, (4 * H, H), minval=-k,
                                           maxval=k, dtype=jnp.float32),
                "b_ih": jax.random.uniform(k3, (4 * H,), minval=-k,
                                           maxval=k, dtype=jnp.float32),
                "b_hh": jax.random.uniform(k4, (4 * H,), minval=-k,
                                           maxval=k, dtype=jnp.float32),
            }
        raw["lstm"].append(lp)
    kfc = 1.0 / math.sqrt(2 * H)
    key, k1, k2 = jax.random.split(key, 3)
    raw["fc"] = {
        "w": jax.random.uniform(k1, (output_size, 2 * H), minval=-kfc,
                                maxval=kfc, dtype=jnp.float32),
        "b": jax.random.uniform(k2, (output_size,), minval=-kfc,
                                maxval=kfc, dtype=jnp.float32),
    }
    return raw


def _pack_gate_cols(m_f, m_b, H):
    """Per-direction (..., 4H) matrices in PyTorch gate order [i, f, g, o]
    -> (..., 8H) in kernel order [i_f,i_b,f_f,f_b,o_f,o_b,g_f,g_b]."""
    def blk(m, j):
        return m[..., j * H:(j + 1) * H]
    return jnp.concatenate(
        [blk(m_f, 0), blk(m_b, 0),      # i
         blk(m_f, 1), blk(m_b, 1),      # f
         blk(m_f, 3), blk(m_b, 3),      # o
         blk(m_f, 2), blk(m_b, 2)],     # g
        axis=-1)


def pack_params(raw):
    """Repack PyTorch-layout params into the fused-kernel layout."""
    H = raw["lstm"][0]["f"]["w_hh"].shape[1]
    layers = []
    for lp in raw["lstm"]:
        f, b = lp["f"], lp["b"]
        wih_f, wih_b = f["w_ih"].T, b["w_ih"].T      # (D, 4H)
        whh_f, whh_b = f["w_hh"].T, b["w_hh"].T      # (H, 4H)
        wih = jnp.concatenate(
            [_pack_gate_cols(wih_f, jnp.zeros_like(wih_b), H),
             _pack_gate_cols(jnp.zeros_like(wih_f), wih_b, H)], axis=0)  # (2D, 8H)
        whh = jnp.concatenate(
            [_pack_gate_cols(whh_f, jnp.zeros_like(whh_b), H),
             _pack_gate_cols(jnp.zeros_like(whh_f), whh_b, H)], axis=0)  # (2H, 8H)
        bias = _pack_gate_cols((f["b_ih"] + f["b_hh"])[None, :],
                               (b["b_ih"] + b["b_hh"])[None, :], H)      # (1, 8H)
        layers.append({"wih": wih, "whh": whh, "bias": bias})
    return {"layers": layers,
            "fc_w": raw["fc"]["w"].T,           # (2H, O)
            "fc_b": raw["fc"]["b"][None, :]}    # (1, O)


# ----------------------------------------------------------------------------
# Pure-JAX reference (full bidirectional computation, PyTorch layout weights)
# ----------------------------------------------------------------------------

def reference_forward(x, raw):
    B, T, _ = x.shape
    H = raw["lstm"][0]["f"]["w_hh"].shape[1]

    def run_dir(x_tm, p):
        bias = p["b_ih"] + p["b_hh"]

        def step(carry, xt):
            h, c = carry
            g = xt @ p["w_ih"].T + h @ p["w_hh"].T + bias
            i = jax.nn.sigmoid(g[:, 0:H])
            f = jax.nn.sigmoid(g[:, H:2 * H])
            gg = jnp.tanh(g[:, 2 * H:3 * H])
            o = jax.nn.sigmoid(g[:, 3 * H:4 * H])
            c = f * c + i * gg
            h = o * jnp.tanh(c)
            return (h, c), h

        z = jnp.zeros((B, H), jnp.float32)
        _, hs = jax.lax.scan(step, (z, z), x_tm)
        return hs

    layer_in = jnp.transpose(x, (1, 0, 2)).astype(jnp.float32)   # (T, B, D)
    for lp in raw["lstm"]:
        h_f = run_dir(layer_in, lp["f"])
        h_b = run_dir(layer_in[::-1], lp["b"])[::-1]
        layer_in = jnp.concatenate([h_f, h_b], axis=-1)           # (T, B, 2H)
    return layer_in[-1] @ raw["fc"]["w"].T + raw["fc"]["b"]


# ----------------------------------------------------------------------------
# Main
# ----------------------------------------------------------------------------

if __name__ == "__main__":
    B, T = 2, 8
    INPUT_SIZE, HIDDEN_SIZE, OUTPUT_SIZE, NUM_LAYERS = 8, 32, 4, 2

    key = jax.random.PRNGKey(0)
    key, kx, kp = jax.random.split(key, 3)
    x = jax.random.normal(kx, (B, T, INPUT_SIZE), dtype=jnp.float32)

    raw = init_raw_params(kp, INPUT_SIZE, HIDDEN_SIZE, OUTPUT_SIZE, NUM_LAYERS)
    kparams = pack_params(raw)

    out = jax.block_until_ready(lstm_model_forward_jit(x, kparams))

    ref = reference_forward(x, raw)
    assert out.shape == (B, OUTPUT_SIZE)
    assert jnp.allclose(out, ref, rtol=2e-4, atol=2e-4), "mismatch vs reference"

    print("KERNEL_OK")
</pallas_src>

<mosaic_0001>
module attributes {stable_mosaic.version = 11 : i64} {
  func.func @fused_bilstm_fc_kernel(%arg0: memref<16x16xf32, #tpu.memory_space<vmem>>, %arg1: memref<16x256xf32, #tpu.memory_space<vmem>>, %arg2: memref<64x256xf32, #tpu.memory_space<vmem>>, %arg3: memref<1x256xf32, #tpu.memory_space<vmem>>, %arg4: memref<128x256xf32, #tpu.memory_space<vmem>>, %arg5: memref<64x256xf32, #tpu.memory_space<vmem>>, %arg6: memref<1x256xf32, #tpu.memory_space<vmem>>, %arg7: memref<64x4xf32, #tpu.memory_space<vmem>>, %arg8: memref<1x4xf32, #tpu.memory_space<vmem>>, %arg9: memref<2x4xf32, #tpu.memory_space<vmem>>) attributes {dimension_semantics = [], scalar_prefetch = 0 : i64, scratch_operands = 0 : i64, tpu.core_type = #tpu.core_type<tc>} {
    %c0 = arith.constant 0 : index
    %c0_0 = arith.constant 0 : index
    %0 = vector.load %arg0[%c0, %c0_0] : memref<16x16xf32, #tpu.memory_space<vmem>>, vector<16x16xf32>
    %c0_1 = arith.constant 0 : index
    %c0_2 = arith.constant 0 : index
    %1 = vector.load %arg1[%c0_1, %c0_2] : memref<16x256xf32, #tpu.memory_space<vmem>>, vector<16x256xf32>
    %c0_3 = arith.constant 0 : index
    %c0_4 = arith.constant 0 : index
    %2 = vector.load %arg2[%c0_3, %c0_4] : memref<64x256xf32, #tpu.memory_space<vmem>>, vector<64x256xf32>
    %c0_5 = arith.constant 0 : index
    %c0_6 = arith.constant 0 : index
    %3 = vector.load %arg3[%c0_5, %c0_6] : memref<1x256xf32, #tpu.memory_space<vmem>>, vector<1x256xf32>
    %cst = arith.constant dense<0.000000e+00> : vector<16x256xf32>
    %4 = tpu.matmul %0, %1, %cst {dimension_numbers = #tpu.dot_dimension_numbers<[1], [0], [0], [1], [0, 0, 1, 1], [], []>} : vector<16x16xf32>, vector<16x256xf32>, vector<16x256xf32> -> vector<16x256xf32>
    %5 = vector.broadcast %3 : vector<1x256xf32> to vector<16x256xf32>
    %6 = arith.addf %4, %5 : vector<16x256xf32>
    %cst_7 = arith.constant 0.000000e+00 : f32
    %7 = vector.broadcast %cst_7 : f32 to vector<2x64xf32>
    %cst_8 = arith.constant 0.000000e+00 : f32
    %8 = vector.broadcast %cst_8 : f32 to vector<2x64xf32>
    %9 = vector.extract_strided_slice %6 {offsets = [0, 0], sizes = [2, 256], strides = [1, 1]} : vector<16x256xf32> to vector<2x256xf32>
    %cst_9 = arith.constant dense<0.000000e+00> : vector<2x256xf32>
    %10 = tpu.matmul %7, %2, %cst_9 {dimension_numbers = #tpu.dot_dimension_numbers<[1], [0], [0], [1], [0, 0, 1, 1], [], []>} : vector<2x64xf32>, vector<64x256xf32>, vector<2x256xf32> -> vector<2x256xf32>
    %11 = arith.addf %9, %10 : vector<2x256xf32>
    %12 = vector.extract_strided_slice %11 {offsets = [0, 0], sizes = [2, 192], strides = [1, 1]} : vector<2x256xf32> to vector<2x192xf32>
    %13 = arith.negf %12 : vector<2x192xf32>
    %14 = math.exp %13 : vector<2x192xf32>
    %cst_10 = arith.constant 1.000000e+00 : f32
    %15 = vector.broadcast %cst_10 : f32 to vector<2x192xf32>
    %16 = arith.addf %15, %14 : vector<2x192xf32>
    %17 = arith.divf %15, %16 : vector<2x192xf32>
    %18 = vector.extract_strided_slice %11 {offsets = [0, 192], sizes = [2, 64], strides = [1, 1]} : vector<2x256xf32> to vector<2x64xf32>
    %19 = math.tanh %18 : vector<2x64xf32>
    %20 = vector.extract_strided_slice %17 {offsets = [0, 64], sizes = [2, 64], strides = [1, 1]} : vector<2x192xf32> to vector<2x64xf32>
    %21 = arith.mulf %20, %8 : vector<2x64xf32>
    %22 = vector.extract_strided_slice %17 {offsets = [0, 0], sizes = [2, 64], strides = [1, 1]} : vector<2x192xf32> to vector<2x64xf32>
    %23 = arith.mulf %22, %19 : vector<2x64xf32>
    %24 = arith.addf %21, %23 : vector<2x64xf32>
    %25 = vector.extract_strided_slice %17 {offsets = [0, 128], sizes = [2, 64], strides = [1, 1]} : vector<2x192xf32> to vector<2x64xf32>
    %26 = math.tanh %24 : vector<2x64xf32>
    %27 = arith.mulf %25, %26 : vector<2x64xf32>
    %28 = vector.extract_strided_slice %6 {offsets = [2, 0], sizes = [2, 256], strides = [1, 1]} : vector<16x256xf32> to vector<2x256xf32>
    %cst_11 = arith.constant dense<0.000000e+00> : vector<2x256xf32>
    %29 = tpu.matmul %27, %2, %cst_11 {dimension_numbers = #tpu.dot_dimension_numbers<[1], [0], [0], [1], [0, 0, 1, 1], [], []>} : vector<2x64xf32>, vector<64x256xf32>, vector<2x256xf32> -> vector<2x256xf32>
    %30 = arith.addf %28, %29 : vector<2x256xf32>
    %31 = vector.extract_strided_slice %30 {offsets = [0, 0], sizes = [2, 192], strides = [1, 1]} : vector<2x256xf32> to vector<2x192xf32>
    %32 = arith.negf %31 : vector<2x192xf32>
    %33 = math.exp %32 : vector<2x192xf32>
    %cst_12 = arith.constant 1.000000e+00 : f32
    %34 = vector.broadcast %cst_12 : f32 to vector<2x192xf32>
    %35 = arith.addf %34, %33 : vector<2x192xf32>
    %36 = arith.divf %34, %35 : vector<2x192xf32>
    %37 = vector.extract_strided_slice %30 {offsets = [0, 192], sizes = [2, 64], strides = [1, 1]} : vector<2x256xf32> to vector<2x64xf32>
    %38 = math.tanh %37 : vector<2x64xf32>
    %39 = vector.extract_strided_slice %36 {offsets = [0, 64], sizes = [2, 64], strides = [1, 1]} : vector<2x192xf32> to vector<2x64xf32>
    %40 = arith.mulf %39, %24 : vector<2x64xf32>
    %41 = vector.extract_strided_slice %36 {offsets = [0, 0], sizes = [2, 64], strides = [1, 1]} : vector<2x192xf32> to vector<2x64xf32>
    %42 = arith.mulf %41, %38 : vector<2x64xf32>
    %43 = arith.addf %40, %42 : vector<2x64xf32>
    %44 = vector.extract_strided_slice %36 {offsets = [0, 128], sizes = [2, 64], strides = [1, 1]} : vector<2x192xf32> to vector<2x64xf32>
    %45 = math.tanh %43 : vector<2x64xf32>
    %46 = arith.mulf %44, %45 : vector<2x64xf32>
    %47 = vector.extract_strided_slice %6 {offsets = [4, 0], sizes = [2, 256], strides = [1, 1]} : vector<16x256xf32> to vector<2x256xf32>
    %cst_13 = arith.constant dense<0.000000e+00> : vector<2x256xf32>
    %48 = tpu.matmul %46, %2, %cst_13 {dimension_numbers = #tpu.dot_dimension_numbers<[1], [0], [0], [1], [0, 0, 1, 1], [], []>} : vector<2x64xf32>, vector<64x256xf32>, vector<2x256xf32> -> vector<2x256xf32>
    %49 = arith.addf %47, %48 : vector<2x256xf32>
    %50 = vector.extract_strided_slice %49 {offsets = [0, 0], sizes = [2, 192], strides = [1, 1]} : vector<2x256xf32> to vector<2x192xf32>
    %51 = arith.negf %50 : vector<2x192xf32>
    %52 = math.exp %51 : vector<2x192xf32>
    %cst_14 = arith.constant 1.000000e+00 : f32
    %53 = vector.broadcast %cst_14 : f32 to vector<2x192xf32>
    %54 = arith.addf %53, %52 : vector<2x192xf32>
    %55 = arith.divf %53, %54 : vector<2x192xf32>
    %56 = vector.extract_strided_slice %49 {offsets = [0, 192], sizes = [2, 64], strides = [1, 1]} : vector<2x256xf32> to vector<2x64xf32>
    %57 = math.tanh %56 : vector<2x64xf32>
    %58 = vector.extract_strided_slice %55 {offsets = [0, 64], sizes = [2, 64], strides = [1, 1]} : vector<2x192xf32> to vector<2x64xf32>
    %59 = arith.mulf %58, %43 : vector<2x64xf32>
    %60 = vector.extract_strided_slice %55 {offsets = [0, 0], sizes = [2, 64], strides = [1, 1]} : vector<2x192xf32> to vector<2x64xf32>
    %61 = arith.mulf %60, %57 : vector<2x64xf32>
    %62 = arith.addf %59, %61 : vector<2x64xf32>
    %63 = vector.extract_strided_slice %55 {offsets = [0, 128], sizes = [2, 64], strides = [1, 1]} : vector<2x192xf32> to vector<2x64xf32>
    %64 = math.tanh %62 : vector<2x64xf32>
    %65 = arith.mulf %63, %64 : vector<2x64xf32>
    %66 = vector.extract_strided_slice %6 {offsets = [6, 0], sizes = [2, 256], strides = [1, 1]} : vector<16x256xf32> to vector<2x256xf32>
    %cst_15 = arith.constant dense<0.000000e+00> : vector<2x256xf32>
    %67 = tpu.matmul %65, %2, %cst_15 {dimension_numbers = #tpu.dot_dimension_numbers<[1], [0], [0], [1], [0, 0, 1, 1], [], []>} : vector<2x64xf32>, vector<64x256xf32>, vector<2x256xf32> -> vector<2x256xf32>
    %68 = arith.addf %66, %67 : vector<2x256xf32>
    %69 = vector.extract_strided_slice %68 {offsets = [0, 0], sizes = [2, 192], strides = [1, 1]} : vector<2x256xf32> to vector<2x192xf32>
    %70 = arith.negf %69 : vector<2x192xf32>
    %71 = math.exp %70 : vector<2x192xf32>
    %cst_16 = arith.constant 1.000000e+00 : f32
    %72 = vector.broadcast %cst_16 : f32 to vector<2x192xf32>
    %73 = arith.addf %72, %71 : vector<2x192xf32>
    %74 = arith.divf %72, %73 : vector<2x192xf32>
    %75 = vector.extract_strided_slice %68 {offsets = [0, 192], sizes = [2, 64], strides = [1, 1]} : vector<2x256xf32> to vector<2x64xf32>
    %76 = math.tanh %75 : vector<2x64xf32>
    %77 = vector.extract_strided_slice %74 {offsets = [0, 64], sizes = [2, 64], strides = [1, 1]} : vector<2x192xf32> to vector<2x64xf32>
    %78 = arith.mulf %77, %62 : vector<2x64xf32>
    %79 = vector.extract_strided_slice %74 {offsets = [0, 0], sizes = [2, 64], strides = [1, 1]} : vector<2x192xf32> to vector<2x64xf32>
    %80 = arith.mulf %79, %76 : vector<2x64xf32>
    %81 = arith.addf %78, %80 : vector<2x64xf32>
    %82 = vector.extract_strided_slice %74 {offsets = [0, 128], sizes = [2, 64], strides = [1, 1]} : vector<2x192xf32> to vector<2x64xf32>
    %83 = math.tanh %81 : vector<2x64xf32>
    %84 = arith.mulf %82, %83 : vector<2x64xf32>
    %85 = vector.extract_strided_slice %6 {offsets = [8, 0], sizes = [2, 256], strides = [1, 1]} : vector<16x256xf32> to vector<2x256xf32>
    %cst_17 = arith.constant dense<0.000000e+00> : vector<2x256xf32>
    %86 = tpu.matmul %84, %2, %cst_17 {dimension_numbers = #tpu.dot_dimension_numbers<[1], [0], [0], [1], [0, 0, 1, 1], [], []>} : vector<2x64xf32>, vector<64x256xf32>, vector<2x256xf32> -> vector<2x256xf32>
    %87 = arith.addf %85, %86 : vector<2x256xf32>
    %88 = vector.extract_strided_slice %87 {offsets = [0, 0], sizes = [2, 192], strides = [1, 1]} : vector<2x256xf32> to vector<2x192xf32>
    %89 = arith.negf %88 : vector<2x192xf32>
    %90 = math.exp %89 : vector<2x192xf32>
    %cst_18 = arith.constant 1.000000e+00 : f32
    %91 = vector.broadcast %cst_18 : f32 to vector<2x192xf32>
    %92 = arith.addf %91, %90 : vector<2x192xf32>
    %93 = arith.divf %91, %92 : vector<2x192xf32>
    %94 = vector.extract_strided_slice %87 {offsets = [0, 192], sizes = [2, 64], strides = [1, 1]} : vector<2x256xf32> to vector<2x64xf32>
    %95 = math.tanh %94 : vector<2x64xf32>
    %96 = vector.extract_strided_slice %93 {offsets = [0, 64], sizes = [2, 64], strides = [1, 1]} : vector<2x192xf32> to vector<2x64xf32>
    %97 = arith.mulf %96, %81 : vector<2x64xf32>
    %98 = vector.extract_strided_slice %93 {offsets = [0, 0], sizes = [2, 64], strides = [1, 1]} : vector<2x192xf32> to vector<2x64xf32>
    %99 = arith.mulf %98, %95 : vector<2x64xf32>
    %100 = arith.addf %97, %99 : vector<2x64xf32>
    %101 = vector.extract_strided_slice %93 {offsets = [0, 128], sizes = [2, 64], strides = [1, 1]} : vector<2x192xf32> to vector<2x64xf32>
    %102 = math.tanh %100 : vector<2x64xf32>
    %103 = arith.mulf %101, %102 : vector<2x64xf32>
    %104 = vector.extract_strided_slice %6 {offsets = [10, 0], sizes = [2, 256], strides = [1, 1]} : vector<16x256xf32> to vector<2x256xf32>
    %cst_19 = arith.constant dense<0.000000e+00> : vector<2x256xf32>
    %105 = tpu.matmul %103, %2, %cst_19 {dimension_numbers = #tpu.dot_dimension_numbers<[1], [0], [0], [1], [0, 0, 1, 1], [], []>} : vector<2x64xf32>, vector<64x256xf32>, vector<2x256xf32> -> vector<2x256xf32>
    %106 = arith.addf %104, %105 : vector<2x256xf32>
    %107 = vector.extract_strided_slice %106 {offsets = [0, 0], sizes = [2, 192], strides = [1, 1]} : vector<2x256xf32> to vector<2x192xf32>
    %108 = arith.negf %107 : vector<2x192xf32>
    %109 = math.exp %108 : vector<2x192xf32>
    %cst_20 = arith.constant 1.000000e+00 : f32
    %110 = vector.broadcast %cst_20 : f32 to vector<2x192xf32>
    %111 = arith.addf %110, %109 : vector<2x192xf32>
    %112 = arith.divf %110, %111 : vector<2x192xf32>
    %113 = vector.extract_strided_slice %106 {offsets = [0, 192], sizes = [2, 64], strides = [1, 1]} : vector<2x256xf32> to vector<2x64xf32>
    %114 = math.tanh %113 : vector<2x64xf32>
    %115 = vector.extract_strided_slice %112 {offsets = [0, 64], sizes = [2, 64], strides = [1, 1]} : vector<2x192xf32> to vector<2x64xf32>
    %116 = arith.mulf %115, %100 : vector<2x64xf32>
    %117 = vector.extract_strided_slice %112 {offsets = [0, 0], sizes = [2, 64], strides = [1, 1]} : vector<2x192xf32> to vector<2x64xf32>
    %118 = arith.mulf %117, %114 : vector<2x64xf32>
    %119 = arith.addf %116, %118 : vector<2x64xf32>
    %120 = vector.extract_strided_slice %112 {offsets = [0, 128], sizes = [2, 64], strides = [1, 1]} : vector<2x192xf32> to vector<2x64xf32>
    %121 = math.tanh %119 : vector<2x64xf32>
    %122 = arith.mulf %120, %121 : vector<2x64xf32>
    %123 = vector.extract_strided_slice %6 {offsets = [12, 0], sizes = [2, 256], strides = [1, 1]} : vector<16x256xf32> to vector<2x256xf32>
    %cst_21 = arith.constant dense<0.000000e+00> : vector<2x256xf32>
    %124 = tpu.matmul %122, %2, %cst_21 {dimension_numbers = #tpu.dot_dimension_numbers<[1], [0], [0], [1], [0, 0, 1, 1], [], []>} : vector<2x64xf32>, vector<64x256xf32>, vector<2x256xf32> -> vector<2x256xf32>
    %125 = arith.addf %123, %124 : vector<2x256xf32>
    %126 = vector.extract_strided_slice %125 {offsets = [0, 0], sizes = [2, 192], strides = [1, 1]} : vector<2x256xf32> to vector<2x192xf32>
    %127 = arith.negf %126 : vector<2x192xf32>
    %128 = math.exp %127 : vector<2x192xf32>
    %cst_22 = arith.constant 1.000000e+00 : f32
    %129 = vector.broadcast %cst_22 : f32 to vector<2x192xf32>
    %130 = arith.addf %129, %128 : vector<2x192xf32>
    %131 = arith.divf %129, %130 : vector<2x192xf32>
    %132 = vector.extract_strided_slice %125 {offsets = [0, 192], sizes = [2, 64], strides = [1, 1]} : vector<2x256xf32> to vector<2x64xf32>
    %133 = math.tanh %132 : vector<2x64xf32>
    %134 = vector.extract_strided_slice %131 {offsets = [0, 64], sizes = [2, 64], strides = [1, 1]} : vector<2x192xf32> to vector<2x64xf32>
    %135 = arith.mulf %134, %119 : vector<2x64xf32>
    %136 = vector.extract_strided_slice %131 {offsets = [0, 0], sizes = [2, 64], strides = [1, 1]} : vector<2x192xf32> to vector<2x64xf32>
    %137 = arith.mulf %136, %133 : vector<2x64xf32>
    %138 = arith.addf %135, %137 : vector<2x64xf32>
    %139 = vector.extract_strided_slice %131 {offsets = [0, 128], sizes = [2, 64], strides = [1, 1]} : vector<2x192xf32> to vector<2x64xf32>
    %140 = math.tanh %138 : vector<2x64xf32>
    %141 = arith.mulf %139, %140 : vector<2x64xf32>
    %142 = vector.extract_strided_slice %6 {offsets = [14, 0], sizes = [2, 256], strides = [1, 1]} : vector<16x256xf32> to vector<2x256xf32>
    %cst_23 = arith.constant dense<0.000000e+00> : vector<2x256xf32>
    %143 = tpu.matmul %141, %2, %cst_23 {dimension_numbers = #tpu.dot_dimension_numbers<[1], [0], [0], [1], [0, 0, 1, 1], [], []>} : vector<2x64xf32>, vector<64x256xf32>, vector<2x256xf32> -> vector<2x256xf32>
    %144 = arith.addf %142, %143 : vector<2x256xf32>
    %145 = vector.extract_strided_slice %144 {offsets = [0, 0], sizes = [2, 192], strides = [1, 1]} : vector<2x256xf32> to vector<2x192xf32>
    %146 = arith.negf %145 : vector<2x192xf32>
    %147 = math.exp %146 : vector<2x192xf32>
    %cst_24 = arith.constant 1.000000e+00 : f32
    %148 = vector.broadcast %cst_24 : f32 to vector<2x192xf32>
    %149 = arith.addf %148, %147 : vector<2x192xf32>
    %150 = arith.divf %148, %149 : vector<2x192xf32>
    %151 = vector.extract_strided_slice %144 {offsets = [0, 192], sizes = [2, 64], strides = [1, 1]} : vector<2x256xf32> to vector<2x64xf32>
    %152 = math.tanh %151 : vector<2x64xf32>
    %153 = vector.extract_strided_slice %150 {offsets = [0, 64], sizes = [2, 64], strides = [1, 1]} : vector<2x192xf32> to vector<2x64xf32>
    %154 = arith.mulf %153, %138 : vector<2x64xf32>
    %155 = vector.extract_strided_slice %150 {offsets = [0, 0], sizes = [2, 64], strides = [1, 1]} : vector<2x192xf32> to vector<2x64xf32>
    %156 = arith.mulf %155, %152 : vector<2x64xf32>
    %157 = arith.addf %154, %156 : vector<2x64xf32>
    %158 = vector.extract_strided_slice %150 {offsets = [0, 128], sizes = [2, 64], strides = [1, 1]} : vector<2x192xf32> to vector<2x64xf32>
    %159 = math.tanh %157 : vector<2x64xf32>
    %160 = arith.mulf %158, %159 : vector<2x64xf32>
    %161 = tpu.concatenate %27, %46, %65, %84, %103, %122, %141, %160 in 0 : vector<2x64xf32>, vector<2x64xf32>, vector<2x64xf32>, vector<2x64xf32>, vector<2x64xf32>, vector<2x64xf32>, vector<2x64xf32>, vector<2x64xf32> -> vector<16x64xf32>
    %162 = tpu.concatenate %160, %141, %122, %103, %84, %65, %46, %27 in 0 : vector<2x64xf32>, vector<2x64xf32>, vector<2x64xf32>, vector<2x64xf32>, vector<2x64xf32>, vector<2x64xf32>, vector<2x64xf32>, vector<2x64xf32> -> vector<16x64xf32>
    %163 = vector.extract_strided_slice %161 {offsets = [0, 0], sizes = [16, 32], strides = [1, 1]} : vector<16x64xf32> to vector<16x32xf32>
    %164 = vector.extract_strided_slice %162 {offsets = [0, 32], sizes = [16, 32], strides = [1, 1]} : vector<16x64xf32> to vector<16x32xf32>
    %165 = vector.extract_strided_slice %162 {offsets = [0, 0], sizes = [16, 32], strides = [1, 1]} : vector<16x64xf32> to vector<16x32xf32>
    %166 = vector.extract_strided_slice %161 {offsets = [0, 32], sizes = [16, 32], strides = [1, 1]} : vector<16x64xf32> to vector<16x32xf32>
    %167 = tpu.concatenate %163, %164, %165, %166 in 1 : vector<16x32xf32>, vector<16x32xf32>, vector<16x32xf32>, vector<16x32xf32> -> vector<16x128xf32>
    %c0_25 = arith.constant 0 : index
    %c0_26 = arith.constant 0 : index
    %168 = vector.load %arg4[%c0_25, %c0_26] : memref<128x256xf32, #tpu.memory_space<vmem>>, vector<128x256xf32>
    %c0_27 = arith.constant 0 : index
    %c0_28 = arith.constant 0 : index
    %169 = vector.load %arg5[%c0_27, %c0_28] : memref<64x256xf32, #tpu.memory_space<vmem>>, vector<64x256xf32>
    %c0_29 = arith.constant 0 : index
    %c0_30 = arith.constant 0 : index
    %170 = vector.load %arg6[%c0_29, %c0_30] : memref<1x256xf32, #tpu.memory_space<vmem>>, vector<1x256xf32>
    %cst_31 = arith.constant dense<0.000000e+00> : vector<16x256xf32>
    %171 = tpu.matmul %167, %168, %cst_31 {dimension_numbers = #tpu.dot_dimension_numbers<[1], [0], [0], [1], [0, 0, 1, 1], [], []>} : vector<16x128xf32>, vector<128x256xf32>, vector<16x256xf32> -> vector<16x256xf32>
    %172 = vector.broadcast %170 : vector<1x256xf32> to vector<16x256xf32>
    %173 = arith.addf %171, %172 : vector<16x256xf32>
    %cst_32 = arith.constant 0.000000e+00 : f32
    %174 = vector.broadcast %cst_32 : f32 to vector<2x64xf32>
    %cst_33 = arith.constant 0.000000e+00 : f32
    %175 = vector.broadcast %cst_33 : f32 to vector<2x64xf32>
    %176 = vector.extract_strided_slice %173 {offsets = [0, 0], sizes = [2, 256], strides = [1, 1]} : vector<16x256xf32> to vector<2x256xf32>
    %cst_34 = arith.constant dense<0.000000e+00> : vector<2x256xf32>
    %177 = tpu.matmul %174, %169, %cst_34 {dimension_numbers = #tpu.dot_dimension_numbers<[1], [0], [0], [1], [0, 0, 1, 1], [], []>} : vector<2x64xf32>, vector<64x256xf32>, vector<2x256xf32> -> vector<2x256xf32>
    %178 = arith.addf %176, %177 : vector<2x256xf32>
    %179 = vector.extract_strided_slice %178 {offsets = [0, 0], sizes = [2, 192], strides = [1, 1]} : vector<2x256xf32> to vector<2x192xf32>
    %180 = arith.negf %179 : vector<2x192xf32>
    %181 = math.exp %180 : vector<2x192xf32>
    %cst_35 = arith.constant 1.000000e+00 : f32
    %182 = vector.broadcast %cst_35 : f32 to vector<2x192xf32>
    %183 = arith.addf %182, %181 : vector<2x192xf32>
    %184 = arith.divf %182, %183 : vector<2x192xf32>
    %185 = vector.extract_strided_slice %178 {offsets = [0, 192], sizes = [2, 64], strides = [1, 1]} : vector<2x256xf32> to vector<2x64xf32>
    %186 = math.tanh %185 : vector<2x64xf32>
    %187 = vector.extract_strided_slice %184 {offsets = [0, 64], sizes = [2, 64], strides = [1, 1]} : vector<2x192xf32> to vector<2x64xf32>
    %188 = arith.mulf %187, %175 : vector<2x64xf32>
    %189 = vector.extract_strided_slice %184 {offsets = [0, 0], sizes = [2, 64], strides = [1, 1]} : vector<2x192xf32> to vector<2x64xf32>
    %190 = arith.mulf %189, %186 : vector<2x64xf32>
    %191 = arith.addf %188, %190 : vector<2x64xf32>
    %192 = vector.extract_strided_slice %184 {offsets = [0, 128], sizes = [2, 64], strides = [1, 1]} : vector<2x192xf32> to vector<2x64xf32>
    %193 = math.tanh %191 : vector<2x64xf32>
    %194 = arith.mulf %192, %193 : vector<2x64xf32>
    %195 = vector.extract_strided_slice %173 {offsets = [2, 0], sizes = [2, 256], strides = [1, 1]} : vector<16x256xf32> to vector<2x256xf32>
    %cst_36 = arith.constant dense<0.000000e+00> : vector<2x256xf32>
    %196 = tpu.matmul %194, %169, %cst_36 {dimension_numbers = #tpu.dot_dimension_numbers<[1], [0], [0], [1], [0, 0, 1, 1], [], []>} : vector<2x64xf32>, vector<64x256xf32>, vector<2x256xf32> -> vector<2x256xf32>
    %197 = arith.addf %195, %196 : vector<2x256xf32>
    %198 = vector.extract_strided_slice %197 {offsets = [0, 0], sizes = [2, 192], strides = [1, 1]} : vector<2x256xf32> to vector<2x192xf32>
    %199 = arith.negf %198 : vector<2x192xf32>
    %200 = math.exp %199 : vector<2x192xf32>
    %cst_37 = arith.constant 1.000000e+00 : f32
    %201 = vector.broadcast %cst_37 : f32 to vector<2x192xf32>
    %202 = arith.addf %201, %200 : vector<2x192xf32>
    %203 = arith.divf %201, %202 : vector<2x192xf32>
    %204 = vector.extract_strided_slice %197 {offsets = [0, 192], sizes = [2, 64], strides = [1, 1]} : vector<2x256xf32> to vector<2x64xf32>
    %205 = math.tanh %204 : vector<2x64xf32>
    %206 = vector.extract_strided_slice %203 {offsets = [0, 64], sizes = [2, 64], strides = [1, 1]} : vector<2x192xf32> to vector<2x64xf32>
    %207 = arith.mulf %206, %191 : vector<2x64xf32>
    %208 = vector.extract_strided_slice %203 {offsets = [0, 0], sizes = [2, 64], strides = [1, 1]} : vector<2x192xf32> to vector<2x64xf32>
    %209 = arith.mulf %208, %205 : vector<2x64xf32>
    %210 = arith.addf %207, %209 : vector<2x64xf32>
    %211 = vector.extract_strided_slice %203 {offsets = [0, 128], sizes = [2, 64], strides = [1, 1]} : vector<2x192xf32> to vector<2x64xf32>
    %212 = math.tanh %210 : vector<2x64xf32>
    %213 = arith.mulf %211, %212 : vector<2x64xf32>
    %214 = vector.extract_strided_slice %173 {offsets = [4, 0], sizes = [2, 256], strides = [1, 1]} : vector<16x256xf32> to vector<2x256xf32>
    %cst_38 = arith.constant dense<0.000000e+00> : vector<2x256xf32>
    %215 = tpu.matmul %213, %169, %cst_38 {dimension_numbers = #tpu.dot_dimension_numbers<[1], [0], [0], [1], [0, 0, 1, 1], [], []>} : vector<2x64xf32>, vector<64x256xf32>, vector<2x256xf32> -> vector<2x256xf32>
    %216 = arith.addf %214, %215 : vector<2x256xf32>
    %217 = vector.extract_strided_slice %216 {offsets = [0, 0], sizes = [2, 192], strides = [1, 1]} : vector<2x256xf32> to vector<2x192xf32>
    %218 = arith.negf %217 : vector<2x192xf32>
    %219 = math.exp %218 : vector<2x192xf32>
    %cst_39 = arith.constant 1.000000e+00 : f32
    %220 = vector.broadcast %cst_39 : f32 to vector<2x192xf32>
    %221 = arith.addf %220, %219 : vector<2x192xf32>
    %222 = arith.divf %220, %221 : vector<2x192xf32>
    %223 = vector.extract_strided_slice %216 {offsets = [0, 192], sizes = [2, 64], strides = [1, 1]} : vector<2x256xf32> to vector<2x64xf32>
    %224 = math.tanh %223 : vector<2x64xf32>
    %225 = vector.extract_strided_slice %222 {offsets = [0, 64], sizes = [2, 64], strides = [1, 1]} : vector<2x192xf32> to vector<2x64xf32>
    %226 = arith.mulf %225, %210 : vector<2x64xf32>
    %227 = vector.extract_strided_slice %222 {offsets = [0, 0], sizes = [2, 64], strides = [1, 1]} : vector<2x192xf32> to vector<2x64xf32>
    %228 = arith.mulf %227, %224 : vector<2x64xf32>
    %229 = arith.addf %226, %228 : vector<2x64xf32>
    %230 = vector.extract_strided_slice %222 {offsets = [0, 128], sizes = [2, 64], strides = [1, 1]} : vector<2x192xf32> to vector<2x64xf32>
    %231 = math.tanh %229 : vector<2x64xf32>
    %232 = arith.mulf %230, %231 : vector<2x64xf32>
    %233 = vector.extract_strided_slice %173 {offsets = [6, 0], sizes = [2, 256], strides = [1, 1]} : vector<16x256xf32> to vector<2x256xf32>
    %cst_40 = arith.constant dense<0.000000e+00> : vector<2x256xf32>
    %234 = tpu.matmul %232, %169, %cst_40 {dimension_numbers = #tpu.dot_dimension_numbers<[1], [0], [0], [1], [0, 0, 1, 1], [], []>} : vector<2x64xf32>, vector<64x256xf32>, vector<2x256xf32> -> vector<2x256xf32>
    %235 = arith.addf %233, %234 : vector<2x256xf32>
    %236 = vector.extract_strided_slice %235 {offsets = [0, 0], sizes = [2, 192], strides = [1, 1]} : vector<2x256xf32> to vector<2x192xf32>
    %237 = arith.negf %236 : vector<2x192xf32>
    %238 = math.exp %237 : vector<2x192xf32>
    %cst_41 = arith.constant 1.000000e+00 : f32
    %239 = vector.broadcast %cst_41 : f32 to vector<2x192xf32>
    %240 = arith.addf %239, %238 : vector<2x192xf32>
    %241 = arith.divf %239, %240 : vector<2x192xf32>
    %242 = vector.extract_strided_slice %235 {offsets = [0, 192], sizes = [2, 64], strides = [1, 1]} : vector<2x256xf32> to vector<2x64xf32>
    %243 = math.tanh %242 : vector<2x64xf32>
    %244 = vector.extract_strided_slice %241 {offsets = [0, 64], sizes = [2, 64], strides = [1, 1]} : vector<2x192xf32> to vector<2x64xf32>
    %245 = arith.mulf %244, %229 : vector<2x64xf32>
    %246 = vector.extract_strided_slice %241 {offsets = [0, 0], sizes = [2, 64], strides = [1, 1]} : vector<2x192xf32> to vector<2x64xf32>
    %247 = arith.mulf %246, %243 : vector<2x64xf32>
    %248 = arith.addf %245, %247 : vector<2x64xf32>
    %249 = vector.extract_strided_slice %241 {offsets = [0, 128], sizes = [2, 64], strides = [1, 1]} : vector<2x192xf32> to vector<2x64xf32>
    %250 = math.tanh %248 : vector<2x64xf32>
    %251 = arith.mulf %249, %250 : vector<2x64xf32>
    %252 = vector.extract_strided_slice %173 {offsets = [8, 0], sizes = [2, 256], strides = [1, 1]} : vector<16x256xf32> to vector<2x256xf32>
    %cst_42 = arith.constant dense<0.000000e+00> : vector<2x256xf32>
    %253 = tpu.matmul %251, %169, %cst_42 {dimension_numbers = #tpu.dot_dimension_numbers<[1], [0], [0], [1], [0, 0, 1, 1], [], []>} : vector<2x64xf32>, vector<64x256xf32>, vector<2x256xf32> -> vector<2x256xf32>
    %254 = arith.addf %252, %253 : vector<2x256xf32>
    %255 = vector.extract_strided_slice %254 {offsets = [0, 0], sizes = [2, 192], strides = [1, 1]} : vector<2x256xf32> to vector<2x192xf32>
    %256 = arith.negf %255 : vector<2x192xf32>
    %257 = math.exp %256 : vector<2x192xf32>
    %cst_43 = arith.constant 1.000000e+00 : f32
    %258 = vector.broadcast %cst_43 : f32 to vector<2x192xf32>
    %259 = arith.addf %258, %257 : vector<2x192xf32>
    %260 = arith.divf %258, %259 : vector<2x192xf32>
    %261 = vector.extract_strided_slice %254 {offsets = [0, 192], sizes = [2, 64], strides = [1, 1]} : vector<2x256xf32> to vector<2x64xf32>
    %262 = math.tanh %261 : vector<2x64xf32>
    %263 = vector.extract_strided_slice %260 {offsets = [0, 64], sizes = [2, 64], strides = [1, 1]} : vector<2x192xf32> to vector<2x64xf32>
    %264 = arith.mulf %263, %248 : vector<2x64xf32>
    %265 = vector.extract_strided_slice %260 {offsets = [0, 0], sizes = [2, 64], strides = [1, 1]} : vector<2x192xf32> to vector<2x64xf32>
    %266 = arith.mulf %265, %262 : vector<2x64xf32>
    %267 = arith.addf %264, %266 : vector<2x64xf32>
    %268 = vector.extract_strided_slice %260 {offsets = [0, 128], sizes = [2, 64], strides = [1, 1]} : vector<2x192xf32> to vector<2x64xf32>
    %269 = math.tanh %267 : vector<2x64xf32>
    %270 = arith.mulf %268, %269 : vector<2x64xf32>
    %271 = vector.extract_strided_slice %173 {offsets = [10, 0], sizes = [2, 256], strides = [1, 1]} : vector<16x256xf32> to vector<2x256xf32>
    %cst_44 = arith.constant dense<0.000000e+00> : vector<2x256xf32>
    %272 = tpu.matmul %270, %169, %cst_44 {dimension_numbers = #tpu.dot_dimension_numbers<[1], [0], [0], [1], [0, 0, 1, 1], [], []>} : vector<2x64xf32>, vector<64x256xf32>, vector<2x256xf32> -> vector<2x256xf32>
    %273 = arith.addf %271, %272 : vector<2x256xf32>
    %274 = vector.extract_strided_slice %273 {offsets = [0, 0], sizes = [2, 192], strides = [1, 1]} : vector<2x256xf32> to vector<2x192xf32>
    %275 = arith.negf %274 : vector<2x192xf32>
    %276 = math.exp %275 : vector<2x192xf32>
    %cst_45 = arith.constant 1.000000e+00 : f32
    %277 = vector.broadcast %cst_45 : f32 to vector<2x192xf32>
    %278 = arith.addf %277, %276 : vector<2x192xf32>
    %279 = arith.divf %277, %278 : vector<2x192xf32>
    %280 = vector.extract_strided_slice %273 {offsets = [0, 192], sizes = [2, 64], strides = [1, 1]} : vector<2x256xf32> to vector<2x64xf32>
    %281 = math.tanh %280 : vector<2x64xf32>
    %282 = vector.extract_strided_slice %279 {offsets = [0, 64], sizes = [2, 64], strides = [1, 1]} : vector<2x192xf32> to vector<2x64xf32>
    %283 = arith.mulf %282, %267 : vector<2x64xf32>
    %284 = vector.extract_strided_slice %279 {offsets = [0, 0], sizes = [2, 64], strides = [1, 1]} : vector<2x192xf32> to vector<2x64xf32>
    %285 = arith.mulf %284, %281 : vector<2x64xf32>
    %286 = arith.addf %283, %285 : vector<2x64xf32>
    %287 = vector.extract_strided_slice %279 {offsets = [0, 128], sizes = [2, 64], strides = [1, 1]} : vector<2x192xf32> to vector<2x64xf32>
    %288 = math.tanh %286 : vector<2x64xf32>
    %289 = arith.mulf %287, %288 : vector<2x64xf32>
    %290 = vector.extract_strided_slice %173 {offsets = [12, 0], sizes = [2, 256], strides = [1, 1]} : vector<16x256xf32> to vector<2x256xf32>
    %cst_46 = arith.constant dense<0.000000e+00> : vector<2x256xf32>
    %291 = tpu.matmul %289, %169, %cst_46 {dimension_numbers = #tpu.dot_dimension_numbers<[1], [0], [0], [1], [0, 0, 1, 1], [], []>} : vector<2x64xf32>, vector<64x256xf32>, vector<2x256xf32> -> vector<2x256xf32>
    %292 = arith.addf %290, %291 : vector<2x256xf32>
    %293 = vector.extract_strided_slice %292 {offsets = [0, 0], sizes = [2, 192], strides = [1, 1]} : vector<2x256xf32> to vector<2x192xf32>
    %294 = arith.negf %293 : vector<2x192xf32>
    %295 = math.exp %294 : vector<2x192xf32>
    %cst_47 = arith.constant 1.000000e+00 : f32
    %296 = vector.broadcast %cst_47 : f32 to vector<2x192xf32>
    %297 = arith.addf %296, %295 : vector<2x192xf32>
    %298 = arith.divf %296, %297 : vector<2x192xf32>
    %299 = vector.extract_strided_slice %292 {offsets = [0, 192], sizes = [2, 64], strides = [1, 1]} : vector<2x256xf32> to vector<2x64xf32>
    %300 = math.tanh %299 : vector<2x64xf32>
    %301 = vector.extract_strided_slice %298 {offsets = [0, 64], sizes = [2, 64], strides = [1, 1]} : vector<2x192xf32> to vector<2x64xf32>
    %302 = arith.mulf %301, %286 : vector<2x64xf32>
    %303 = vector.extract_strided_slice %298 {offsets = [0, 0], sizes = [2, 64], strides = [1, 1]} : vector<2x192xf32> to vector<2x64xf32>
    %304 = arith.mulf %303, %300 : vector<2x64xf32>
    %305 = arith.addf %302, %304 : vector<2x64xf32>
    %306 = vector.extract_strided_slice %298 {offsets = [0, 128], sizes = [2, 64], strides = [1, 1]} : vector<2x192xf32> to vector<2x64xf32>
    %307 = math.tanh %305 : vector<2x64xf32>
    %308 = arith.mulf %306, %307 : vector<2x64xf32>
    %309 = vector.extract_strided_slice %173 {offsets = [14, 0], sizes = [2, 256], strides = [1, 1]} : vector<16x256xf32> to vector<2x256xf32>
    %cst_48 = arith.constant dense<0.000000e+00> : vector<2x256xf32>
    %310 = tpu.matmul %308, %169, %cst_48 {dimension_numbers = #tpu.dot_dimension_numbers<[1], [0], [0], [1], [0, 0, 1, 1], [], []>} : vector<2x64xf32>, vector<64x256xf32>, vector<2x256xf32> -> vector<2x256xf32>
    %311 = arith.addf %309, %310 : vector<2x256xf32>
    %312 = vector.extract_strided_slice %311 {offsets = [0, 0], sizes = [2, 192], strides = [1, 1]} : vector<2x256xf32> to vector<2x192xf32>
    %313 = arith.negf %312 : vector<2x192xf32>
    %314 = math.exp %313 : vector<2x192xf32>
    %cst_49 = arith.constant 1.000000e+00 : f32
    %315 = vector.broadcast %cst_49 : f32 to vector<2x192xf32>
    %316 = arith.addf %315, %314 : vector<2x192xf32>
    %317 = arith.divf %315, %316 : vector<2x192xf32>
    %318 = vector.extract_strided_slice %311 {offsets = [0, 192], sizes = [2, 64], strides = [1, 1]} : vector<2x256xf32> to vector<2x64xf32>
    %319 = math.tanh %318 : vector<2x64xf32>
    %320 = vector.extract_strided_slice %317 {offsets = [0, 64], sizes = [2, 64], strides = [1, 1]} : vector<2x192xf32> to vector<2x64xf32>
    %321 = arith.mulf %320, %305 : vector<2x64xf32>
    %322 = vector.extract_strided_slice %317 {offsets = [0, 0], sizes = [2, 64], strides = [1, 1]} : vector<2x192xf32> to vector<2x64xf32>
    %323 = arith.mulf %322, %319 : vector<2x64xf32>
    %324 = arith.addf %321, %323 : vector<2x64xf32>
    %325 = vector.extract_strided_slice %317 {offsets = [0, 128], sizes = [2, 64], strides = [1, 1]} : vector<2x192xf32> to vector<2x64xf32>
    %326 = math.tanh %324 : vector<2x64xf32>
    %327 = arith.mulf %325, %326 : vector<2x64xf32>
    %328 = vector.extract_strided_slice %327 {offsets = [0, 0], sizes = [2, 32], strides = [1, 1]} : vector<2x64xf32> to vector<2x32xf32>
    %329 = vector.extract_strided_slice %194 {offsets = [0, 32], sizes = [2, 32], strides = [1, 1]} : vector<2x64xf32> to vector<2x32xf32>
    %330 = tpu.concatenate %328, %329 in 1 : vector<2x32xf32>, vector<2x32xf32> -> vector<2x64xf32>
    %c0_50 = arith.constant 0 : index
    %c0_51 = arith.constant 0 : index
    %331 = vector.load %arg7[%c0_50, %c0_51] : memref<64x4xf32, #tpu.memory_space<vmem>>, vector<64x4xf32>
    %cst_52 = arith.constant dense<0.000000e+00> : vector<2x4xf32>
    %332 = tpu.matmul %330, %331, %cst_52 {dimension_numbers = #tpu.dot_dimension_numbers<[1], [0], [0], [1], [0, 0, 1, 1], [], []>} : vector<2x64xf32>, vector<64x4xf32>, vector<2x4xf32> -> vector<2x4xf32>
    %c0_53 = arith.constant 0 : index
    %c0_54 = arith.constant 0 : index
    %333 = vector.load %arg8[%c0_53, %c0_54] : memref<1x4xf32, #tpu.memory_space<vmem>>, vector<1x4xf32>
    %334 = vector.broadcast %333 : vector<1x4xf32> to vector<2x4xf32>
    %335 = arith.addf %332, %334 : vector<2x4xf32>
    %c0_55 = arith.constant 0 : index
    %c0_56 = arith.constant 0 : index
    %336 = vector.load %arg9[%c0_55, %c0_56] : memref<2x4xf32, #tpu.memory_space<vmem>>, vector<2x4xf32>
    tpu.vector_store %arg9[%c0_55, %c0_56], %335 {strides = array<i32>} : memref<2x4xf32, #tpu.memory_space<vmem>>, vector<2x4xf32>,
    return
  }
}

</mosaic_0001>

<llo_original>
// kernel: lstm_model_forward.1
$region0: #{lstm_model_forward.1}
  #allocation0 [shape = 'u32[]', space=smem, size = 0x4, offset = 0x4, fixed_abs, tag = 'smem constant byte address 0x4 - core index']
  #allocation1 [shape = 'u32[144,128]{1,0:T(1,128)}', space=vmem, size = 0x12000, scoped, tag = 'internal scratch']
  %s0 = inlined_call_operand.vmem [shape: f32[16,16], index: 0, kind: input, shape index: {}]
  %s1 = inlined_call_operand.vmem [shape: f32[16,256], index: 1, kind: input, shape index: {}]
  %s2 = inlined_call_operand.vmem [shape: f32[64,256], index: 2, kind: input, shape index: {}]
  %s3 = inlined_call_operand.vmem [shape: f32[1,256], index: 3, kind: input, shape index: {}]
  %s4 = inlined_call_operand.hbm [shape: f32[128,256], index: 4, kind: input, shape index: {}]
  %s5 = inlined_call_operand.hbm [shape: f32[64,256], index: 5, kind: input, shape index: {}]
  %s6 = inlined_call_operand.vmem [shape: f32[1,256], index: 6, kind: input, shape index: {}]
  %s7 = inlined_call_operand.vmem [shape: f32[64,4], index: 7, kind: input, shape index: {}]
  %s8 = inlined_call_operand.vmem [shape: f32[1,4], index: 8, kind: input, shape index: {}]
  %s9 = inlined_call_operand.hbm [shape: f32[2,4], index: 9, kind: output, shape index: {}]
  %s10 = sld [smem:[#allocation0]]
  $region54: #{lstm_model_forward.1} parent=0
    _
  %s12 = ssub.s32 1, %s10
  %s13 = scalar_select 0, %s12, %s10
  $region1: #{lstm_model_forward.1} parent=0
    #allocation2 [shape = 'u8[131072]{0}', space=vmem, size = 0x20000, scoped, tag = 'input window, operand 4, single buffered']
    #allocation3 [shape = 's32[1]{0}', space=sflag, size = 0x4, scoped, tag = 'scoped memory for lstm_model_forward.1']
    #allocation4 [shape = 's32[1]{0}', space=sflag, size = 0x4, scoped, tag = 'scoped memory for lstm_model_forward.1']
    #allocation5 [shape = 'u8[65536]{0}', space=vmem, size = 0x10000, scoped, tag = 'input window, operand 5, single buffered']
    #allocation6 [shape = 's32[1]{0}', space=sflag, size = 0x4, scoped, tag = 'scoped memory for lstm_model_forward.1']
    #allocation7 [shape = 'u8[1024]{0}', space=vmem, size = 0x400, scoped, tag = 'output window, operand 0, single buffered']
    %14 = vsyncpa [#allocation3], 0
    %15 = vsyncpa [#allocation6], 0
    %16 = vsyncpa [#allocation4], 0
    // Predicated region
    $region2: #{lstm_model_forward.1} parent=1 // pred_check
      _
    $region3: #{lstm_model_forward.1} parent=1 // pred_check_branch
      %18 = sbr.rel (0) target = $region5
    $region4: #{lstm_model_forward.1} parent=1 // pred_region
      _
    $region5: #{lstm_model_forward.1} parent=1 // pred_fallthru
      _
    // Predicated region
    $region6: #{lstm_model_forward.1} parent=1 // pred_check
      _
    $region7: #{lstm_model_forward.1} parent=1 // pred_check_branch
      %20 = sbr.rel (0) target = $region9
    $region8: #{lstm_model_forward.1} parent=1 // pred_region
      _
    $region9: #{lstm_model_forward.1} parent=1 // pred_fallthru
      _
    // Predicated region
    $region10: #{lstm_model_forward.1} parent=1 // pred_check
      _
    $region11: #{lstm_model_forward.1} parent=1 // pred_check_branch
      %22 = sbr.rel (0) target = $region13
    $region12: #{lstm_model_forward.1} parent=1 // pred_region
      _
    $region13: #{lstm_model_forward.1} parent=1 // pred_fallthru
      _
    // Predicated region
    $region14: #{lstm_model_forward.1} parent=1 // pred_check
      _
    $region15: #{lstm_model_forward.1} parent=1 // pred_check_branch
      %24 = sbr.rel (0) target = $region17
    $region16: #{lstm_model_forward.1} parent=1 // pred_region
      _
    $region17: #{lstm_model_forward.1} parent=1 // pred_fallthru
      _
    // Predicated region
    $region18: #{lstm_model_forward.1} parent=1 // pred_check
      _
    $region19: #{lstm_model_forward.1} parent=1 // pred_check_branch
      %26 = sbr.rel (0) target = $region21
    $region20: #{lstm_model_forward.1} parent=1 // pred_region
      %s28 = ssub.s32 4096, 4096
      %29 = vsyncadd [#allocation3], %s28
      %s30 = sshll.u32 [#allocation2], 4
      %s31 = int_to_ptr.vmem [resolvable:$true] %s30
      %36 = dma.hbm_to_vmem [thread:$0]  %s4, 4096, %s31, [#allocation3], 256, 256, 16
    $region21: #{lstm_model_forward.1} parent=1 // pred_fallthru
      _
    // Predicated region
    $region22: #{lstm_model_forward.1} parent=1 // pred_check
      _
    $region23: #{lstm_model_forward.1} parent=1 // pred_check_branch
      %38 = sbr.rel (0) target = $region25
    $region24: #{lstm_model_forward.1} parent=1 // pred_region
      %s40 = ssub.s32 2048, 2048
      %41 = vsyncadd [#allocation6], %s40
      %s42 = sshll.u32 [#allocation5], 4
      %s43 = int_to_ptr.vmem [resolvable:$true] %s42
      %48 = dma.hbm_to_vmem [thread:$0]  %s5, 2048, %s43, [#allocation6], 256, 256, 16
    $region25: #{lstm_model_forward.1} parent=1 // pred_fallthru
      _
    // Predicated region
    $region26: #{lstm_model_forward.1} parent=1 // pred_check
      _
    $region27: #{lstm_model_forward.1} parent=1 // pred_check_branch
      %50 = sbr.rel (0) target = $region29
    $region28: #{lstm_model_forward.1} parent=1 // pred_region
      _
    $region29: #{lstm_model_forward.1} parent=1 // pred_fallthru
      _
    // Predicated region
    $region30: #{lstm_model_forward.1} parent=1 // pred_check
      _
    $region31: #{lstm_model_forward.1} parent=1 // pred_check_branch
      %52 = sbr.rel (0) target = $region33
    $region32: #{lstm_model_forward.1} parent=1 // pred_region
      _
    $region33: #{lstm_model_forward.1} parent=1 // pred_fallthru
      _
    // Predicated region
    $region34: #{lstm_model_forward.1} parent=1 // pred_check
      _
    $region35: #{lstm_model_forward.1} parent=1 // pred_check_branch
      %54 = sbr.rel (0) target = $region37
    $region36: #{lstm_model_forward.1} parent=1 // pred_region
      _
    $region37: #{lstm_model_forward.1} parent=1 // pred_fallthru
      _
    // Predicated region
    $region38: #{lstm_model_forward.1} parent=1 // pred_check
      _
    $region39: #{lstm_model_forward.1} parent=1 // pred_check_branch
      %56 = sbr.rel (0) target = $region41
    $region40: #{lstm_model_forward.1} parent=1 // pred_region
      %57 = dma.done [#allocation3], 4096
    $region41: #{lstm_model_forward.1} parent=1 // pred_fallthru
      _
    // Predicated region
    $region42: #{lstm_model_forward.1} parent=1 // pred_check
      _
    $region43: #{lstm_model_forward.1} parent=1 // pred_check_branch
      %59 = sbr.rel (0) target = $region45
    $region44: #{lstm_model_forward.1} parent=1 // pred_region
      %60 = dma.done [#allocation6], 2048
    $region45: #{lstm_model_forward.1} parent=1 // pred_fallthru
      _
    %v61 = vld [vmem:[%s0] sm:$0xff]
    %v62 = vld [vmem:[%s0 + $0x8] sm:$0xff]
    %v63 = vld [vmem:[%s1] sm:$0xff]
    %v64 = vld [vmem:[%s1 + $0x8] sm:$0xff]
    %v65 = vld [vmem:[%s1 + $0x10] sm:$0xff]
    %v66 = vld [vmem:[%s1 + $0x18] sm:$0xff]
    %v67 = vld [vmem:[%s2] sm:$0xff]
    %v68 = vld [vmem:[%s2 + $0x8] sm:$0xff]
    %v69 = vld [vmem:[%s2 + $0x10] sm:$0xff]
    %v70 = vld [vmem:[%s2 + $0x18] sm:$0xff]
    %v71 = vld [vmem:[%s2 + $0x20] sm:$0xff]
    %v72 = vld [vmem:[%s2 + $0x28] sm:$0xff]
    %v73 = vld [vmem:[%s2 + $0x30] sm:$0xff]
    %v74 = vld [vmem:[%s2 + $0x38] sm:$0xff]
    %v75 = vld [vmem:[%s2 + $0x40] sm:$0xff]
    %v76 = vld [vmem:[%s2 + $0x48] sm:$0xff]
    %v77 = vld [vmem:[%s2 + $0x50] sm:$0xff]
    %v78 = vld [vmem:[%s2 + $0x58] sm:$0xff]
    %v79 = vld [vmem:[%s2 + $0x60] sm:$0xff]
    %v80 = vld [vmem:[%s2 + $0x68] sm:$0xff]
    %v81 = vld [vmem:[%s2 + $0x70] sm:$0xff]
    %v82 = vld [vmem:[%s2 + $0x78] sm:$0xff]
    %v83 = vld [vmem:[%s3] sm:$0x3]
    %v85 = vlaneseq
    %v86 = vshrl.u32 %v85, 7
    %v87 = vsub.s32 0, %v86
    %v88 = vrot.slane %v83, %v87
    %v89 = vlaneseq
    %v90 = vshrl.u32 %v89, 7
    %v91 = vsub.s32 1, %v90
    %v92 = vrot.slane %v83, %v91
    %vm95 = vcmask 130048
    %v97 = vsel %vm95, %v61, 0
    %v100 = vsel %vm95, %v62, 0
    %102 = vmatprep.subr.mxu0 %v64
    %103 = vmatpush1.msra.mxu0 %v63
    %104 = vmatprep.subr.mxu0 %v66
    %105 = vmatpush1.msra.mxu0 %v65
    %106 = vmatprep.subr.mxu0 0.0
    %107 = vmatpush1.msra.mxu0 0.0
    %108 = vmatprep.subr.mxu0 0.0
    %109 = vmatpush1.msra.mxu0 0.0
    %110 = vmatprep.subr.mxu0 0.0
    %111 = vmatpush1.msra.mxu0 0.0
    %112 = vmatprep.subr.mxu0 0.0
    %113 = vmatpush1.msra.mxu0 0.0
    %114 = vmatprep.subr.mxu0 0.0
    %115 = vmatpush1.msra.mxu0 0.0
    %116 = vmatprep.subr.mxu0 0.0
    %117 = vmatpush1.msra.mxu0 0.0
    %118 = vmatprep.subr.mxu0 0.0
    %119 = vmatpush1.msra.mxu0 0.0
    %120 = vmatprep.subr.mxu0 0.0
    %121 = vmatpush1.msra.mxu0 0.0
    %122 = vmatprep.subr.mxu0 0.0
    %123 = vmatpush1.msra.mxu0 0.0
    %124 = vmatprep.subr.mxu0 0.0
    %125 = vmatpush1.msra.mxu0 0.0
    %126 = vmatprep.subr.mxu0 0.0
    %127 = vmatpush1.msra.mxu0 0.0
    %128 = vmatprep.subr.mxu0 0.0
    %129 = vmatpush1.msra.mxu0 0.0
    %130 = vmatprep.subr.mxu0 0.0
    %131 = vmatpush1.msra.mxu0 0.0
    %132 = vmatprep.subr.mxu0 0.0
    %133 = vmatpush1.msra.mxu0 0.0
    %134 = vmatprep.subr.mxu0 0.0
    %135 = vmatpush1.msra.mxu0 0.0
    %136 = vmatprep.subr.mxu0 0.0
    %137 = vmatpush1.msra.mxu0 0.0
    %138 = vmatprep.subr.mxu0 0.0
    %139 = vmatpush1.msra.mxu0 0.0
    %140 = vmatprep.subr.mxu0 0.0
    %141 = vmatpush1.msra.mxu0 0.0
    %142 = vmatprep.subr.mxu0 0.0
    %143 = vmatpush1.msra.mxu0 0.0
    %144 = vmatprep.subr.mxu0 0.0
    %145 = vmatpush1.msra.mxu0 0.0
    %146 = vmatprep.subr.mxu0 0.0
    %147 = vmatpush1.msra.mxu0 0.0
    %148 = vmatprep.subr.mxu0 0.0
    %149 = vmatpush1.msra.mxu0 0.0
    %150 = vmatprep.subr.mxu0 0.0
    %151 = vmatpush1.msra.mxu0 0.0
    %152 = vmatprep.subr.mxu0 0.0
    %153 = vmatpush1.msra.mxu0 0.0
    %154 = vmatprep.subr.mxu0 0.0
    %155 = vmatpush1.msra.mxu0 0.0
    %156 = vmatprep.subr.mxu0 0.0
    %157 = vmatpush1.msra.mxu0 0.0
    %158 = vmatprep.subr.mxu0 0.0
    %159 = vmatpush1.msra.mxu0 0.0
    %160 = vmatprep.subr.mxu0 0.0
    %161 = vmatpush1.msra.mxu0 0.0
    %162 = vmatprep.subr.mxu0 0.0
    %163 = vmatpush1.msra.mxu0 0.0
    %164 = vmatprep.subr.mxu0 0.0
    %165 = vmatpush1.msra.mxu0 0.0
    %166 = vmatprep.mubr.f32.mxu0 0.0
    %167 = vmatmul.mubr.f32.gmra.mrb[0].mxu0 %v97
    %v168 = vpop.f32.mrb[0].mxu0
    %v169 = vadd.f32 %v88, %v168
    %v170 = vpop.f32.mrb[0].mxu0
    %v171 = vadd.f32 %v92, %v170
    %172 = vmatprep.mubr.f32.mxu0 0.0
    %173 = vmatmul.mubr.f32.gmra.mrb[0].mxu0 %v100
    %v174 = vpop.f32.mrb[0].mxu0
    %v175 = vadd.f32 %v88, %v174
    %v176 = vpop.f32.mrb[0].mxu0
    %v177 = vadd.f32 %v92, %v176
    %178 = vdwg.mxu0
    %vm179 = vcmask 523264
    %v181 = vsel %vm179, 0.0, 0
    %183 = vmatprep.subr.mxu0 %v68
    %184 = vmatpush1.msra.mxu0 %v67
    %185 = vmatprep.subr.mxu0 %v70
    %186 = vmatpush1.msra.mxu0 %v69
    %187 = vmatprep.subr.mxu0 %v72
    %188 = vmatpush1.msra.mxu0 %v71
    %189 = vmatprep.subr.mxu0 %v74
    %190 = vmatpush1.msra.mxu0 %v73
    %191 = vmatprep.subr.mxu0 %v76
    %192 = vmatpush1.msra.mxu0 %v75
    %193 = vmatprep.subr.mxu0 %v78
    %194 = vmatpush1.msra.mxu0 %v77
    %195 = vmatprep.subr.mxu0 %v80
    %196 = vmatpush1.msra.mxu0 %v79
    %197 = vmatprep.subr.mxu0 %v82
    %198 = vmatpush1.msra.mxu0 %v81
    %199 = vmatprep.subr.mxu0 0.0
    %200 = vmatpush1.msra.mxu0 0.0
    %201 = vmatprep.subr.mxu0 0.0
    %202 = vmatpush1.msra.mxu0 0.0
    %203 = vmatprep.subr.mxu0 0.0
    %204 = vmatpush1.msra.mxu0 0.0
    %205 = vmatprep.subr.mxu0 0.0
    %206 = vmatpush1.msra.mxu0 0.0
    %207 = vmatprep.subr.mxu0 0.0
    %208 = vmatpush1.msra.mxu0 0.0
    %209 = vmatprep.subr.mxu0 0.0
    %210 = vmatpush1.msra.mxu0 0.0
    %211 = vmatprep.subr.mxu0 0.0
    %212 = vmatpush1.msra.mxu0 0.0
    %213 = vmatprep.subr.mxu0 0.0
    %214 = vmatpush1.msra.mxu0 0.0
    %215 = vmatprep.subr.mxu0 0.0
    %216 = vmatpush1.msra.mxu0 0.0
    %217 = vmatprep.subr.mxu0 0.0
    %218 = vmatpush1.msra.mxu0 0.0
    %219 = vmatprep.subr.mxu0 0.0
    %220 = vmatpush1.msra.mxu0 0.0
    %221 = vmatprep.subr.mxu0 0.0
    %222 = vmatpush1.msra.mxu0 0.0
    %223 = vmatprep.subr.mxu0 0.0
    %224 = vmatpush1.msra.mxu0 0.0
    %225 = vmatprep.subr.mxu0 0.0
    %226 = vmatpush1.msra.mxu0 0.0
    %227 = vmatprep.subr.mxu0 0.0
    %228 = vmatpush1.msra.mxu0 0.0
    %229 = vmatprep.subr.mxu0 0.0
    %230 = vmatpush1.msra.mxu0 0.0
    %231 = vmatprep.subr.mxu0 0.0
    %232 = vmatpush1.msra.mxu0 0.0
    %233 = vmatprep.subr.mxu0 0.0
    %234 = vmatpush1.msra.mxu0 0.0
    %235 = vmatprep.subr.mxu0 0.0
    %236 = vmatpush1.msra.mxu0 0.0
    %237 = vmatprep.subr.mxu0 0.0
    %238 = vmatpush1.msra.mxu0 0.0
    %239 = vmatprep.subr.mxu0 0.0
    %240 = vmatpush1.msra.mxu0 0.0
    %241 = vmatprep.subr.mxu0 0.0
    %242 = vmatpush1.msra.mxu0 0.0
    %243 = vmatprep.subr.mxu0 0.0
    %244 = vmatpush1.msra.mxu0 0.0
    %245 = vmatprep.subr.mxu0 0.0
    %246 = vmatpush1.msra.mxu0 0.0
    %247 = vmatprep.mubr.f32.mxu0 0.0
    %248 = vmatmul.mubr.f32.gmra.mrb[0].mxu0 %v181
    %v249 = vpop.f32.mrb[0].mxu0
    %v250 = vadd.f32 0.0, %v249
    %v251 = vpop.f32.mrb[0].mxu0
    %v252 = vadd.f32 0.0, %v251
    %253 = vdwg.mxu0
    %v254 = vadd.f32 %v169, %v250
    %v255 = vadd.f32 %v171, %v252
    %v256 = vxor.u32 %v254, 2147483648
    %v257 = vxor.u32 %v255, 2147483648
    %v258 = vmul.f32 %v256, 1.442695
    %v259 = vpow.pop %v258
    %v260 = vmul.f32 %v257, 1.442695
    %v261 = vpow.pop %v260
    %v262 = vadd.f32 %v259, 1.0
    %v263 = vadd.f32 %v261, 1.0
    %v264 = vrcp.pop %v262
    %v265 = vmul.f32 1.0, %v264
    %v266 = vrcp.pop %v263
    %v267 = vmul.f32 1.0, %v266
    %v268 = vtanh.pop %v255
    %v269 = vmul.f32 %v265, 0.0
    %271 = vrot.lane.b32.xlu0 %v268, 64
    %v272 = vpop.permute.xlu0 %271
    %v274 = vmul.f32 %v265, %v272
    %276 = vrot.lane.b32.xlu0 %v274, 64
    %v277 = vpop.permute.xlu0 %276
    %v279 = vadd.f32 %v269, %v277
    %v280 = vtanh.pop %v279
    %282 = vrot.lane.b32.xlu0 %v280, 64
    %v283 = vpop.permute.xlu0 %282
    %v285 = vmul.f32 %v267, %v283
    %v287 = vsel %vm179, %v285, 0
    %289 = vmatprep.subr.mxu0 %v68
    %290 = vmatpush1.msra.mxu0 %v67
    %291 = vmatprep.subr.mxu0 %v70
    %292 = vmatpush1.msra.mxu0 %v69
    %293 = vmatprep.subr.mxu0 %v72
    %294 = vmatpush1.msra.mxu0 %v71
    %295 = vmatprep.subr.mxu0 %v74
    %296 = vmatpush1.msra.mxu0 %v73
    %297 = vmatprep.subr.mxu0 %v76
    %298 = vmatpush1.msra.mxu0 %v75
    %299 = vmatprep.subr.mxu0 %v78
    %300 = vmatpush1.msra.mxu0 %v77
    %301 = vmatprep.subr.mxu0 %v80
    %302 = vmatpush1.msra.mxu0 %v79
    %303 = vmatprep.subr.mxu0 %v82
    %304 = vmatpush1.msra.mxu0 %v81
    %305 = vmatprep.subr.mxu0 0.0
    %306 = vmatpush1.msra.mxu0 0.0
    %307 = vmatprep.subr.mxu0 0.0
    %308 = vmatpush1.msra.mxu0 0.0
    %309 = vmatprep.subr.mxu0 0.0
    %310 = vmatpush1.msra.mxu0 0.0
    %311 = vmatprep.subr.mxu0 0.0
    %312 = vmatpush1.msra.mxu0 0.0
    %313 = vmatprep.subr.mxu0 0.0
    %314 = vmatpush1.msra.mxu0 0.0
    %315 = vmatprep.subr.mxu0 0.0
    %316 = vmatpush1.msra.mxu0 0.0
    %317 = vmatprep.subr.mxu0 0.0
    %318 = vmatpush1.msra.mxu0 0.0
    %319 = vmatprep.subr.mxu0 0.0
    %320 = vmatpush1.msra.mxu0 0.0
    %321 = vmatprep.subr.mxu0 0.0
    %322 = vmatpush1.msra.mxu0 0.0
    %323 = vmatprep.subr.mxu0 0.0
    %324 = vmatpush1.msra.mxu0 0.0
    %325 = vmatprep.subr.mxu0 0.0
    %326 = vmatpush1.msra.mxu0 0.0
    %327 = vmatprep.subr.mxu0 0.0
    %328 = vmatpush1.msra.mxu0 0.0
    %329 = vmatprep.subr.mxu0 0.0
    %330 = vmatpush1.msra.mxu0 0.0
    %331 = vmatprep.subr.mxu0 0.0
    %332 = vmatpush1.msra.mxu0 0.0
    %333 = vmatprep.subr.mxu0 0.0
    %334 = vmatpush1.msra.mxu0 0.0
    %335 = vmatprep.subr.mxu0 0.0
    %336 = vmatpush1.msra.mxu0 0.0
    %337 = vmatprep.subr.mxu0 0.0
    %338 = vmatpush1.msra.mxu0 0.0
    %339 = vmatprep.subr.mxu0 0.0
    %340 = vmatpush1.msra.mxu0 0.0
    %341 = vmatprep.subr.mxu0 0.0
    %342 = vmatpush1.msra.mxu0 0.0
    %343 = vmatprep.subr.mxu0 0.0
    %344 = vmatpush1.msra.mxu0 0.0
    %345 = vmatprep.subr.mxu0 0.0
    %346 = vmatpush1.msra.mxu0 0.0
    %347 = vmatprep.subr.mxu0 0.0
    %348 = vmatpush1.msra.mxu0 0.0
    %349 = vmatprep.subr.mxu0 0.0
    %350 = vmatpush1.msra.mxu0 0.0
    %351 = vmatprep.subr.mxu0 0.0
    %352 = vmatpush1.msra.mxu0 0.0
    %353 = vmatprep.mubr.f32.mxu0 0.0
    %354 = vmatmul.mubr.f32.gmra.mrb[0].mxu0 %v287
    %v355 = vpop.f32.mrb[0].mxu0
    %v356 = vadd.f32 0.0, %v355
    %v357 = vpop.f32.mrb[0].mxu0
    %v358 = vadd.f32 0.0, %v357
    %359 = vdwg.mxu0
    %v362 = vrot.slane %v356, 6
    %v363 = vrot.slane %v358, 6
    %v366 = vadd.f32 %v169, %v362
    %v367 = vadd.f32 %v171, %v363
    %v368 = vxor.u32 %v366, 2147483648
    %v369 = vxor.u32 %v367, 2147483648
    %v370 = vmul.f32 %v368, 1.442695
    %v371 = vpow.pop %v370
    %v372 = vmul.f32 %v369, 1.442695
    %v373 = vpow.pop %v372
    %v374 = vadd.f32 %v371, 1.0
    %v375 = vadd.f32 %v373, 1.0
    %v376 = vrcp.pop %v374
    %v377 = vmul.f32 1.0, %v376
    %v378 = vrcp.pop %v375
    %v379 = vmul.f32 1.0, %v378
    %v380 = vtanh.pop %v367
    %v382 = vrot.slane %v279, 6
    %v384 = vmul.f32 %v377, %v382
    %386 = vrot.lane.b32.xlu0 %v380, 64
    %v387 = vpop.permute.xlu0 %386
    %v389 = vmul.f32 %v377, %v387
    %391 = vrot.lane.b32.xlu0 %v389, 64
    %v392 = vpop.permute.xlu0 %391
    %v394 = vadd.f32 %v384, %v392
    %v395 = vtanh.pop %v394
    %397 = vrot.lane.b32.xlu0 %v395, 64
    %v398 = vpop.permute.xlu0 %397
    %v400 = vmul.f32 %v379, %v398
    %v402 = vrot.slane %v400, 2
    %v403 = vsel %vm179, %v402, 0
    %405 = vmatprep.subr.mxu0 %v68
    %406 = vmatpush1.msra.mxu0 %v67
    %407 = vmatprep.subr.mxu0 %v70
    %408 = vmatpush1.msra.mxu0 %v69
    %409 = vmatprep.subr.mxu0 %v72
    %410 = vmatpush1.msra.mxu0 %v71
    %411 = vmatprep.subr.mxu0 %v74
    %412 = vmatpush1.msra.mxu0 %v73
    %413 = vmatprep.subr.mxu0 %v76
    %414 = vmatpush1.msra.mxu0 %v75
    %415 = vmatprep.subr.mxu0 %v78
    %416 = vmatpush1.msra.mxu0 %v77
    %417 = vmatprep.subr.mxu0 %v80
    %418 = vmatpush1.msra.mxu0 %v79
    %419 = vmatprep.subr.mxu0 %v82
    %420 = vmatpush1.msra.mxu0 %v81
    %421 = vmatprep.subr.mxu0 0.0
    %422 = vmatpush1.msra.mxu0 0.0
    %423 = vmatprep.subr.mxu0 0.0
    %424 = vmatpush1.msra.mxu0 0.0
    %425 = vmatprep.subr.mxu0 0.0
    %426 = vmatpush1.msra.mxu0 0.0
    %427 = vmatprep.subr.mxu0 0.0
    %428 = vmatpush1.msra.mxu0 0.0
    %429 = vmatprep.subr.mxu0 0.0
    %430 = vmatpush1.msra.mxu0 0.0
    %431 = vmatprep.subr.mxu0 0.0
    %432 = vmatpush1.msra.mxu0 0.0
    %433 = vmatprep.subr.mxu0 0.0
    %434 = vmatpush1.msra.mxu0 0.0
    %435 = vmatprep.subr.mxu0 0.0
    %436 = vmatpush1.msra.mxu0 0.0
    %437 = vmatprep.subr.mxu0 0.0
    %438 = vmatpush1.msra.mxu0 0.0
    %439 = vmatprep.subr.mxu0 0.0
    %440 = vmatpush1.msra.mxu0 0.0
    %441 = vmatprep.subr.mxu0 0.0
    %442 = vmatpush1.msra.mxu0 0.0
    %443 = vmatprep.subr.mxu0 0.0
    %444 = vmatpush1.msra.mxu0 0.0
    %445 = vmatprep.subr.mxu0 0.0
    %446 = vmatpush1.msra.mxu0 0.0
    %447 = vmatprep.subr.mxu0 0.0
    %448 = vmatpush1.msra.mxu0 0.0
    %449 = vmatprep.subr.mxu0 0.0
    %450 = vmatpush1.msra.mxu0 0.0
    %451 = vmatprep.subr.mxu0 0.0
    %452 = vmatpush1.msra.mxu0 0.0
    %453 = vmatprep.subr.mxu0 0.0
    %454 = vmatpush1.msra.mxu0 0.0
    %455 = vmatprep.subr.mxu0 0.0
    %456 = vmatpush1.msra.mxu0 0.0
    %457 = vmatprep.subr.mxu0 0.0
    %458 = vmatpush1.msra.mxu0 0.0
    %459 = vmatprep.subr.mxu0 0.0
    %460 = vmatpush1.msra.mxu0 0.0
    %461 = vmatprep.subr.mxu0 0.0
    %462 = vmatpush1.msra.mxu0 0.0
    %463 = vmatprep.subr.mxu0 0.0
    %464 = vmatpush1.msra.mxu0 0.0
    %465 = vmatprep.subr.mxu0 0.0
    %466 = vmatpush1.msra.mxu0 0.0
    %467 = vmatprep.subr.mxu0 0.0
    %468 = vmatpush1.msra.mxu0 0.0
    %469 = vmatprep.mubr.f32.mxu0 0.0
    %470 = vmatmul.mubr.f32.gmra.mrb[0].mxu0 %v403
    %v471 = vpop.f32.mrb[0].mxu0
    %v472 = vadd.f32 0.0, %v471
    %v473 = vpop.f32.mrb[0].mxu0
    %v474 = vadd.f32 0.0, %v473
    %475 = vdwg.mxu0
    %v478 = vrot.slane %v472, 4
    %v479 = vrot.slane %v474, 4
    %v482 = vadd.f32 %v169, %v478
    %v483 = vadd.f32 %v171, %v479
    %v484 = vxor.u32 %v482, 2147483648
    %v485 = vxor.u32 %v483, 2147483648
    %v486 = vmul.f32 %v484, 1.442695
    %v487 = vpow.pop %v486
    %v488 = vmul.f32 %v485, 1.442695
    %v489 = vpow.pop %v488
    %v490 = vadd.f32 %v487, 1.0
    %v491 = vadd.f32 %v489, 1.0
    %v492 = vrcp.pop %v490
    %v493 = vmul.f32 1.0, %v492
    %v494 = vrcp.pop %v491
    %v495 = vmul.f32 1.0, %v494
    %v496 = vtanh.pop %v483
    %v498 = vrot.slane %v394, 6
    %v500 = vmul.f32 %v493, %v498
    %502 = vrot.lane.b32.xlu0 %v496, 64
    %v503 = vpop.permute.xlu0 %502
    %v505 = vmul.f32 %v493, %v503
    %507 = vrot.lane.b32.xlu0 %v505, 64
    %v508 = vpop.permute.xlu0 %507
    %v510 = vadd.f32 %v500, %v508
    %v511 = vtanh.pop %v510
    %513 = vrot.lane.b32.xlu0 %v511, 64
    %v514 = vpop.permute.xlu0 %513
    %v516 = vmul.f32 %v495, %v514
    %v518 = vrot.slane %v516, 4
    %v519 = vsel %vm179, %v518, 0
    %521 = vmatprep.subr.mxu0 %v68
    %522 = vmatpush1.msra.mxu0 %v67
    %523 = vmatprep.subr.mxu0 %v70
    %524 = vmatpush1.msra.mxu0 %v69
    %525 = vmatprep.subr.mxu0 %v72
    %526 = vmatpush1.msra.mxu0 %v71
    %527 = vmatprep.subr.mxu0 %v74
    %528 = vmatpush1.msra.mxu0 %v73
    %529 = vmatprep.subr.mxu0 %v76
    %530 = vmatpush1.msra.mxu0 %v75
    %531 = vmatprep.subr.mxu0 %v78
    %532 = vmatpush1.msra.mxu0 %v77
    %533 = vmatprep.subr.mxu0 %v80
    %534 = vmatpush1.msra.mxu0 %v79
    %535 = vmatprep.subr.mxu0 %v82
    %536 = vmatpush1.msra.mxu0 %v81
    %537 = vmatprep.subr.mxu0 0.0
    %538 = vmatpush1.msra.mxu0 0.0
    %539 = vmatprep.subr.mxu0 0.0
    %540 = vmatpush1.msra.mxu0 0.0
    %541 = vmatprep.subr.mxu0 0.0
    %542 = vmatpush1.msra.mxu0 0.0
    %543 = vmatprep.subr.mxu0 0.0
    %544 = vmatpush1.msra.mxu0 0.0
    %545 = vmatprep.subr.mxu0 0.0
    %546 = vmatpush1.msra.mxu0 0.0
    %547 = vmatprep.subr.mxu0 0.0
    %548 = vmatpush1.msra.mxu0 0.0
    %549 = vmatprep.subr.mxu0 0.0
    %550 = vmatpush1.msra.mxu0 0.0
    %551 = vmatprep.subr.mxu0 0.0
    %552 = vmatpush1.msra.mxu0 0.0
    %553 = vmatprep.subr.mxu0 0.0
    %554 = vmatpush1.msra.mxu0 0.0
    %555 = vmatprep.subr.mxu0 0.0
    %556 = vmatpush1.msra.mxu0 0.0
    %557 = vmatprep.subr.mxu0 0.0
    %558 = vmatpush1.msra.mxu0 0.0
    %559 = vmatprep.subr.mxu0 0.0
    %560 = vmatpush1.msra.mxu0 0.0
    %561 = vmatprep.subr.mxu0 0.0
    %562 = vmatpush1.msra.mxu0 0.0
    %563 = vmatprep.subr.mxu0 0.0
    %564 = vmatpush1.msra.mxu0 0.0
    %565 = vmatprep.subr.mxu0 0.0
    %566 = vmatpush1.msra.mxu0 0.0
    %567 = vmatprep.subr.mxu0 0.0
    %568 = vmatpush1.msra.mxu0 0.0
    %569 = vmatprep.subr.mxu0 0.0
    %570 = vmatpush1.msra.mxu0 0.0
    %571 = vmatprep.subr.mxu0 0.0
    %572 = vmatpush1.msra.mxu0 0.0
    %573 = vmatprep.subr.mxu0 0.0
    %574 = vmatpush1.msra.mxu0 0.0
    %575 = vmatprep.subr.mxu0 0.0
    %576 = vmatpush1.msra.mxu0 0.0
    %577 = vmatprep.subr.mxu0 0.0
    %578 = vmatpush1.msra.mxu0 0.0
    %579 = vmatprep.subr.mxu0 0.0
    %580 = vmatpush1.msra.mxu0 0.0
    %581 = vmatprep.subr.mxu0 0.0
    %582 = vmatpush1.msra.mxu0 0.0
    %583 = vmatprep.subr.mxu0 0.0
    %584 = vmatpush1.msra.mxu0 0.0
    %585 = vmatprep.mubr.f32.mxu0 0.0
    %586 = vmatmul.mubr.f32.gmra.mrb[0].mxu0 %v519
    %v587 = vpop.f32.mrb[0].mxu0
    %v588 = vadd.f32 0.0, %v587
    %v589 = vpop.f32.mrb[0].mxu0
    %v590 = vadd.f32 0.0, %v589
    %591 = vdwg.mxu0
    %v594 = vrot.slane %v588, 2
    %v595 = vrot.slane %v590, 2
    %v598 = vadd.f32 %v169, %v594
    %v599 = vadd.f32 %v171, %v595
    %v600 = vxor.u32 %v598, 2147483648
    %v601 = vxor.u32 %v599, 2147483648
    %v602 = vmul.f32 %v600, 1.442695
    %v603 = vpow.pop %v602
    %v604 = vmul.f32 %v601, 1.442695
    %v605 = vpow.pop %v604
    %v606 = vadd.f32 %v603, 1.0
    %v607 = vadd.f32 %v605, 1.0
    %v608 = vrcp.pop %v606
    %v609 = vmul.f32 1.0, %v608
    %v610 = vrcp.pop %v607
    %v611 = vmul.f32 1.0, %v610
    %v612 = vtanh.pop %v599
    %v614 = vrot.slane %v510, 6
    %v616 = vmul.f32 %v609, %v614
    %618 = vrot.lane.b32.xlu0 %v612, 64
    %v619 = vpop.permute.xlu0 %618
    %v621 = vmul.f32 %v609, %v619
    %623 = vrot.lane.b32.xlu0 %v621, 64
    %v624 = vpop.permute.xlu0 %623
    %v626 = vadd.f32 %v616, %v624
    %v627 = vtanh.pop %v626
    %629 = vrot.lane.b32.xlu0 %v627, 64
    %v630 = vpop.permute.xlu0 %629
    %v632 = vmul.f32 %v611, %v630
    %v634 = vrot.slane %v632, 6
    %v635 = vsel %vm179, %v634, 0
    %637 = vmatprep.subr.mxu0 %v68
    %638 = vmatpush1.msra.mxu0 %v67
    %639 = vmatprep.subr.mxu0 %v70
    %640 = vmatpush1.msra.mxu0 %v69
    %641 = vmatprep.subr.mxu0 %v72
    %642 = vmatpush1.msra.mxu0 %v71
    %643 = vmatprep.subr.mxu0 %v74
    %644 = vmatpush1.msra.mxu0 %v73
    %645 = vmatprep.subr.mxu0 %v76
    %646 = vmatpush1.msra.mxu0 %v75
    %647 = vmatprep.subr.mxu0 %v78
    %648 = vmatpush1.msra.mxu0 %v77
    %649 = vmatprep.subr.mxu0 %v80
    %650 = vmatpush1.msra.mxu0 %v79
    %651 = vmatprep.subr.mxu0 %v82
    %652 = vmatpush1.msra.mxu0 %v81
    %653 = vmatprep.subr.mxu0 0.0
    %654 = vmatpush1.msra.mxu0 0.0
    %655 = vmatprep.subr.mxu0 0.0
    %656 = vmatpush1.msra.mxu0 0.0
    %657 = vmatprep.subr.mxu0 0.0
    %658 = vmatpush1.msra.mxu0 0.0
    %659 = vmatprep.subr.mxu0 0.0
    %660 = vmatpush1.msra.mxu0 0.0
    %661 = vmatprep.subr.mxu0 0.0
    %662 = vmatpush1.msra.mxu0 0.0
    %663 = vmatprep.subr.mxu0 0.0
    %664 = vmatpush1.msra.mxu0 0.0
    %665 = vmatprep.subr.mxu0 0.0
    %666 = vmatpush1.msra.mxu0 0.0
    %667 = vmatprep.subr.mxu0 0.0
    %668 = vmatpush1.msra.mxu0 0.0
    %669 = vmatprep.subr.mxu0 0.0
    %670 = vmatpush1.msra.mxu0 0.0
    %671 = vmatprep.subr.mxu0 0.0
    %672 = vmatpush1.msra.mxu0 0.0
    %673 = vmatprep.subr.mxu0 0.0
    %674 = vmatpush1.msra.mxu0 0.0
    %675 = vmatprep.subr.mxu0 0.0
    %676 = vmatpush1.msra.mxu0 0.0
    %677 = vmatprep.subr.mxu0 0.0
    %678 = vmatpush1.msra.mxu0 0.0
    %679 = vmatprep.subr.mxu0 0.0
    %680 = vmatpush1.msra.mxu0 0.0
    %681 = vmatprep.subr.mxu0 0.0
    %682 = vmatpush1.msra.mxu0 0.0
    %683 = vmatprep.subr.mxu0 0.0
    %684 = vmatpush1.msra.mxu0 0.0
    %685 = vmatprep.subr.mxu0 0.0
    %686 = vmatpush1.msra.mxu0 0.0
    %687 = vmatprep.subr.mxu0 0.0
    %688 = vmatpush1.msra.mxu0 0.0
    %689 = vmatprep.subr.mxu0 0.0
    %690 = vmatpush1.msra.mxu0 0.0
    %691 = vmatprep.subr.mxu0 0.0
    %692 = vmatpush1.msra.mxu0 0.0
    %693 = vmatprep.subr.mxu0 0.0
    %694 = vmatpush1.msra.mxu0 0.0
    %695 = vmatprep.subr.mxu0 0.0
    %696 = vmatpush1.msra.mxu0 0.0
    %697 = vmatprep.subr.mxu0 0.0
    %698 = vmatpush1.msra.mxu0 0.0
    %699 = vmatprep.subr.mxu0 0.0
    %700 = vmatpush1.msra.mxu0 0.0
    %701 = vmatprep.mubr.f32.mxu0 0.0
    %702 = vmatmul.mubr.f32.gmra.mrb[0].mxu0 %v635
    %v703 = vpop.f32.mrb[0].mxu0
    %v704 = vadd.f32 0.0, %v703
    %v705 = vpop.f32.mrb[0].mxu0
    %v706 = vadd.f32 0.0, %v705
    %707 = vdwg.mxu0
    %v708 = vadd.f32 %v175, %v704
    %v709 = vadd.f32 %v177, %v706
    %v710 = vxor.u32 %v708, 2147483648
    %v711 = vxor.u32 %v709, 2147483648
    %v712 = vmul.f32 %v710, 1.442695
    %v713 = vpow.pop %v712
    %v714 = vmul.f32 %v711, 1.442695
    %v715 = vpow.pop %v714
    %v716 = vadd.f32 %v713, 1.0
    %v717 = vadd.f32 %v715, 1.0
    %v718 = vrcp.pop %v716
    %v719 = vmul.f32 1.0, %v718
    %v720 = vrcp.pop %v717
    %v721 = vmul.f32 1.0, %v720
    %v722 = vtanh.pop %v709
    %v724 = vrot.slane %v626, 6
    %v726 = vmul.f32 %v719, %v724
    %728 = vrot.lane.b32.xlu0 %v722, 64
    %v729 = vpop.permute.xlu0 %728
    %v731 = vmul.f32 %v719, %v729
    %733 = vrot.lane.b32.xlu0 %v731, 64
    %v734 = vpop.permute.xlu0 %733
    %v736 = vadd.f32 %v726, %v734
    %v737 = vtanh.pop %v736
    %739 = vrot.lane.b32.xlu0 %v737, 64
    %v740 = vpop.permute.xlu0 %739
    %v742 = vmul.f32 %v721, %v740
    %v744 = vsel %vm179, %v742, 0
    %746 = vmatprep.subr.mxu0 %v68
    %747 = vmatpush1.msra.mxu0 %v67
    %748 = vmatprep.subr.mxu0 %v70
    %749 = vmatpush1.msra.mxu0 %v69
    %750 = vmatprep.subr.mxu0 %v72
    %751 = vmatpush1.msra.mxu0 %v71
    %752 = vmatprep.subr.mxu0 %v74
    %753 = vmatpush1.msra.mxu0 %v73
    %754 = vmatprep.subr.mxu0 %v76
    %755 = vmatpush1.msra.mxu0 %v75
    %756 = vmatprep.subr.mxu0 %v78
    %757 = vmatpush1.msra.mxu0 %v77
    %758 = vmatprep.subr.mxu0 %v80
    %759 = vmatpush1.msra.mxu0 %v79
    %760 = vmatprep.subr.mxu0 %v82
    %761 = vmatpush1.msra.mxu0 %v81
    %762 = vmatprep.subr.mxu0 0.0
    %763 = vmatpush1.msra.mxu0 0.0
    %764 = vmatprep.subr.mxu0 0.0
    %765 = vmatpush1.msra.mxu0 0.0
    %766 = vmatprep.subr.mxu0 0.0
    %767 = vmatpush1.msra.mxu0 0.0
    %768 = vmatprep.subr.mxu0 0.0
    %769 = vmatpush1.msra.mxu0 0.0
    %770 = vmatprep.subr.mxu0 0.0
    %771 = vmatpush1.msra.mxu0 0.0
    %772 = vmatprep.subr.mxu0 0.0
    %773 = vmatpush1.msra.mxu0 0.0
    %774 = vmatprep.subr.mxu0 0.0
    %775 = vmatpush1.msra.mxu0 0.0
    %776 = vmatprep.subr.mxu0 0.0
    %777 = vmatpush1.msra.mxu0 0.0
    %778 = vmatprep.subr.mxu0 0.0
    %779 = vmatpush1.msra.mxu0 0.0
    %780 = vmatprep.subr.mxu0 0.0
    %781 = vmatpush1.msra.mxu0 0.0
    %782 = vmatprep.subr.mxu0 0.0
    %783 = vmatpush1.msra.mxu0 0.0
    %784 = vmatprep.subr.mxu0 0.0
    %785 = vmatpush1.msra.mxu0 0.0
    %786 = vmatprep.subr.mxu0 0.0
    %787 = vmatpush1.msra.mxu0 0.0
    %788 = vmatprep.subr.mxu0 0.0
    %789 = vmatpush1.msra.mxu0 0.0
    %790 = vmatprep.subr.mxu0 0.0
    %791 = vmatpush1.msra.mxu0 0.0
    %792 = vmatprep.subr.mxu0 0.0
    %793 = vmatpush1.msra.mxu0 0.0
    %794 = vmatprep.subr.mxu0 0.0
    %795 = vmatpush1.msra.mxu0 0.0
    %796 = vmatprep.subr.mxu0 0.0
    %797 = vmatpush1.msra.mxu0 0.0
    %798 = vmatprep.subr.mxu0 0.0
    %799 = vmatpush1.msra.mxu0 0.0
    %800 = vmatprep.subr.mxu0 0.0
    %801 = vmatpush1.msra.mxu0 0.0
    %802 = vmatprep.subr.mxu0 0.0
    %803 = vmatpush1.msra.mxu0 0.0
    %804 = vmatprep.subr.mxu0 0.0
    %805 = vmatpush1.msra.mxu0 0.0
    %806 = vmatprep.subr.mxu0 0.0
    %807 = vmatpush1.msra.mxu0 0.0
    %808 = vmatprep.subr.mxu0 0.0
    %809 = vmatpush1.msra.mxu0 0.0
    %810 = vmatprep.mubr.f32.mxu0 0.0
    %811 = vmatmul.mubr.f32.gmra.mrb[0].mxu0 %v744
    %v812 = vpop.f32.mrb[0].mxu0
    %v813 = vadd.f32 0.0, %v812
    %v814 = vpop.f32.mrb[0].mxu0
    %v815 = vadd.f32 0.0, %v814
    %816 = vdwg.mxu0
    %v819 = vrot.slane %v813, 6
    %v820 = vrot.slane %v815, 6
    %v823 = vadd.f32 %v175, %v819
    %v824 = vadd.f32 %v177, %v820
    %v825 = vxor.u32 %v823, 2147483648
    %v826 = vxor.u32 %v824, 2147483648
    %v827 = vmul.f32 %v825, 1.442695
    %v828 = vpow.pop %v827
    %v829 = vmul.f32 %v826, 1.442695
    %v830 = vpow.pop %v829
    %v831 = vadd.f32 %v828, 1.0
    %v832 = vadd.f32 %v830, 1.0
    %v833 = vrcp.pop %v831
    %v834 = vmul.f32 1.0, %v833
    %v835 = vrcp.pop %v832
    %v836 = vmul.f32 1.0, %v835
    %v837 = vtanh.pop %v824
    %v839 = vrot.slane %v736, 6
    %v841 = vmul.f32 %v834, %v839
    %843 = vrot.lane.b32.xlu0 %v837, 64
    %v844 = vpop.permute.xlu0 %843
    %v846 = vmul.f32 %v834, %v844
    %848 = vrot.lane.b32.xlu0 %v846, 64
    %v849 = vpop.permute.xlu0 %848
    %v851 = vadd.f32 %v841, %v849
    %v852 = vtanh.pop %v851
    %854 = vrot.lane.b32.xlu0 %v852, 64
    %v855 = vpop.permute.xlu0 %854
    %v857 = vmul.f32 %v836, %v855
    %v859 = vrot.slane %v857, 2
    %v860 = vsel %vm179, %v859, 0
    %862 = vmatprep.subr.mxu0 %v68
    %863 = vmatpush1.msra.mxu0 %v67
    %864 = vmatprep.subr.mxu0 %v70
    %865 = vmatpush1.msra.mxu0 %v69
    %866 = vmatprep.subr.mxu0 %v72
    %867 = vmatpush1.msra.mxu0 %v71
    %868 = vmatprep.subr.mxu0 %v74
    %869 = vmatpush1.msra.mxu0 %v73
    %870 = vmatprep.subr.mxu0 %v76
    %871 = vmatpush1.msra.mxu0 %v75
    %872 = vmatprep.subr.mxu0 %v78
    %873 = vmatpush1.msra.mxu0 %v77
    %874 = vmatprep.subr.mxu0 %v80
    %875 = vmatpush1.msra.mxu0 %v79
    %876 = vmatprep.subr.mxu0 %v82
    %877 = vmatpush1.msra.mxu0 %v81
    %878 = vmatprep.subr.mxu0 0.0
    %879 = vmatpush1.msra.mxu0 0.0
    %880 = vmatprep.subr.mxu0 0.0
    %881 = vmatpush1.msra.mxu0 0.0
    %882 = vmatprep.subr.mxu0 0.0
    %883 = vmatpush1.msra.mxu0 0.0
    %884 = vmatprep.subr.mxu0 0.0
    %885 = vmatpush1.msra.mxu0 0.0
    %886 = vmatprep.subr.mxu0 0.0
    %887 = vmatpush1.msra.mxu0 0.0
    %888 = vmatprep.subr.mxu0 0.0
    %889 = vmatpush1.msra.mxu0 0.0
    %890 = vmatprep.subr.mxu0 0.0
    %891 = vmatpush1.msra.mxu0 0.0
    %892 = vmatprep.subr.mxu0 0.0
    %893 = vmatpush1.msra.mxu0 0.0
    %894 = vmatprep.subr.mxu0 0.0
    %895 = vmatpush1.msra.mxu0 0.0
    %896 = vmatprep.subr.mxu0 0.0
    %897 = vmatpush1.msra.mxu0 0.0
    %898 = vmatprep.subr.mxu0 0.0
    %899 = vmatpush1.msra.mxu0 0.0
    %900 = vmatprep.subr.mxu0 0.0
    %901 = vmatpush1.msra.mxu0 0.0
    %902 = vmatprep.subr.mxu0 0.0
    %903 = vmatpush1.msra.mxu0 0.0
    %904 = vmatprep.subr.mxu0 0.0
    %905 = vmatpush1.msra.mxu0 0.0
    %906 = vmatprep.subr.mxu0 0.0
    %907 = vmatpush1.msra.mxu0 0.0
    %908 = vmatprep.subr.mxu0 0.0
    %909 = vmatpush1.msra.mxu0 0.0
    %910 = vmatprep.subr.mxu0 0.0
    %911 = vmatpush1.msra.mxu0 0.0
    %912 = vmatprep.subr.mxu0 0.0
    %913 = vmatpush1.msra.mxu0 0.0
    %914 = vmatprep.subr.mxu0 0.0
    %915 = vmatpush1.msra.mxu0 0.0
    %916 = vmatprep.subr.mxu0 0.0
    %917 = vmatpush1.msra.mxu0 0.0
    %918 = vmatprep.subr.mxu0 0.0
    %919 = vmatpush1.msra.mxu0 0.0
    %920 = vmatprep.subr.mxu0 0.0
    %921 = vmatpush1.msra.mxu0 0.0
    %922 = vmatprep.subr.mxu0 0.0
    %923 = vmatpush1.msra.mxu0 0.0
    %924 = vmatprep.subr.mxu0 0.0
    %925 = vmatpush1.msra.mxu0 0.0
    %926 = vmatprep.mubr.f32.mxu0 0.0
    %927 = vmatmul.mubr.f32.gmra.mrb[0].mxu0 %v860
    %v928 = vpop.f32.mrb[0].mxu0
    %v929 = vadd.f32 0.0, %v928
    %v930 = vpop.f32.mrb[0].mxu0
    %v931 = vadd.f32 0.0, %v930
    %932 = vdwg.mxu0
    %v935 = vrot.slane %v929, 4
    %v936 = vrot.slane %v931, 4
    %v939 = vadd.f32 %v175, %v935
    %v940 = vadd.f32 %v177, %v936
    %v941 = vxor.u32 %v939, 2147483648
    %v942 = vxor.u32 %v940, 2147483648
    %v943 = vmul.f32 %v941, 1.442695
    %v944 = vpow.pop %v943
    %v945 = vmul.f32 %v942, 1.442695
    %v946 = vpow.pop %v945
    %v947 = vadd.f32 %v944, 1.0
    %v948 = vadd.f32 %v946, 1.0
    %v949 = vrcp.pop %v947
    %v950 = vmul.f32 1.0, %v949
    %v951 = vrcp.pop %v948
    %v952 = vmul.f32 1.0, %v951
    %v953 = vtanh.pop %v940
    %v955 = vrot.slane %v851, 6
    %v957 = vmul.f32 %v950, %v955
    %959 = vrot.lane.b32.xlu0 %v953, 64
    %v960 = vpop.permute.xlu0 %959
    %v962 = vmul.f32 %v950, %v960
    %964 = vrot.lane.b32.xlu0 %v962, 64
    %v965 = vpop.permute.xlu0 %964
    %v967 = vadd.f32 %v957, %v965
    %v968 = vtanh.pop %v967
    %970 = vrot.lane.b32.xlu0 %v968, 64
    %v971 = vpop.permute.xlu0 %970
    %v973 = vmul.f32 %v952, %v971
    %v975 = vrot.slane %v973, 4
    %v976 = vsel %vm179, %v975, 0
    %978 = vmatprep.subr.mxu0 %v68
    %979 = vmatpush1.msra.mxu0 %v67
    %980 = vmatprep.subr.mxu0 %v70
    %981 = vmatpush1.msra.mxu0 %v69
    %982 = vmatprep.subr.mxu0 %v72
    %983 = vmatpush1.msra.mxu0 %v71
    %984 = vmatprep.subr.mxu0 %v74
    %985 = vmatpush1.msra.mxu0 %v73
    %986 = vmatprep.subr.mxu0 %v76
    %987 = vmatpush1.msra.mxu0 %v75
    %988 = vmatprep.subr.mxu0 %v78
    %989 = vmatpush1.msra.mxu0 %v77
    %990 = vmatprep.subr.mxu0 %v80
    %991 = vmatpush1.msra.mxu0 %v79
    %992 = vmatprep.subr.mxu0 %v82
    %993 = vmatpush1.msra.mxu0 %v81
    %994 = vmatprep.subr.mxu0 0.0
    %995 = vmatpush1.msra.mxu0 0.0
    %996 = vmatprep.subr.mxu0 0.0
    %997 = vmatpush1.msra.mxu0 0.0
    %998 = vmatprep.subr.mxu0 0.0
    %999 = vmatpush1.msra.mxu0 0.0
    %1000 = vmatprep.subr.mxu0 0.0
    %1001 = vmatpush1.msra.mxu0 0.0
    %1002 = vmatprep.subr.mxu0 0.0
    %1003 = vmatpush1.msra.mxu0 0.0
    %1004 = vmatprep.subr.mxu0 0.0
    %1005 = vmatpush1.msra.mxu0 0.0
    %1006 = vmatprep.subr.mxu0 0.0
    %1007 = vmatpush1.msra.mxu0 0.0
    %1008 = vmatprep.subr.mxu0 0.0
    %1009 = vmatpush1.msra.mxu0 0.0
    %1010 = vmatprep.subr.mxu0 0.0
    %1011 = vmatpush1.msra.mxu0 0.0
    %1012 = vmatprep.subr.mxu0 0.0
    %1013 = vmatpush1.msra.mxu0 0.0
    %1014 = vmatprep.subr.mxu0 0.0
    %1015 = vmatpush1.msra.mxu0 0.0
    %1016 = vmatprep.subr.mxu0 0.0
    %1017 = vmatpush1.msra.mxu0 0.0
    %1018 = vmatprep.subr.mxu0 0.0
    %1019 = vmatpush1.msra.mxu0 0.0
    %1020 = vmatprep.subr.mxu0 0.0
    %1021 = vmatpush1.msra.mxu0 0.0
    %1022 = vmatprep.subr.mxu0 0.0
    %1023 = vmatpush1.msra.mxu0 0.0
    %1024 = vmatprep.subr.mxu0 0.0
    %1025 = vmatpush1.msra.mxu0 0.0
    %1026 = vmatprep.subr.mxu0 0.0
    %1027 = vmatpush1.msra.mxu0 0.0
    %1028 = vmatprep.subr.mxu0 0.0
    %1029 = vmatpush1.msra.mxu0 0.0
    %1030 = vmatprep.subr.mxu0 0.0
    %1031 = vmatpush1.msra.mxu0 0.0
    %1032 = vmatprep.subr.mxu0 0.0
    %1033 = vmatpush1.msra.mxu0 0.0
    %1034 = vmatprep.subr.mxu0 0.0
    %1035 = vmatpush1.msra.mxu0 0.0
    %1036 = vmatprep.subr.mxu0 0.0
    %1037 = vmatpush1.msra.mxu0 0.0
    %1038 = vmatprep.subr.mxu0 0.0
    %1039 = vmatpush1.msra.mxu0 0.0
    %1040 = vmatprep.subr.mxu0 0.0
    %1041 = vmatpush1.msra.mxu0 0.0
    %1042 = vmatprep.mubr.f32.mxu0 0.0
    %1043 = vmatmul.mubr.f32.gmra.mrb[0].mxu0 %v976
    %v1044 = vpop.f32.mrb[0].mxu0
    %v1045 = vadd.f32 0.0, %v1044
    %v1046 = vpop.f32.mrb[0].mxu0
    %v1047 = vadd.f32 0.0, %v1046
    %1048 = vdwg.mxu0
    %v1051 = vrot.slane %v1045, 2
    %v1052 = vrot.slane %v1047, 2
    %v1055 = vadd.f32 %v175, %v1051
    %v1056 = vadd.f32 %v177, %v1052
    %v1057 = vxor.u32 %v1055, 2147483648
    %v1058 = vxor.u32 %v1056, 2147483648
    %v1059 = vmul.f32 %v1057, 1.442695
    %v1060 = vpow.pop %v1059
    %v1061 = vmul.f32 %v1058, 1.442695
    %v1062 = vpow.pop %v1061
    %v1063 = vadd.f32 %v1060, 1.0
    %v1064 = vadd.f32 %v1062, 1.0
    %v1065 = vrcp.pop %v1063
    %v1066 = vmul.f32 1.0, %v1065
    %v1067 = vrcp.pop %v1064
    %v1068 = vmul.f32 1.0, %v1067
    %v1069 = vtanh.pop %v1056
    %v1071 = vrot.slane %v967, 6
    %v1073 = vmul.f32 %v1066, %v1071
    %1075 = vrot.lane.b32.xlu0 %v1069, 64
    %v1076 = vpop.permute.xlu0 %1075
    %v1078 = vmul.f32 %v1066, %v1076
    %1080 = vrot.lane.b32.xlu0 %v1078, 64
    %v1081 = vpop.permute.xlu0 %1080
    %v1083 = vadd.f32 %v1073, %v1081
    %v1084 = vtanh.pop %v1083
    %1086 = vrot.lane.b32.xlu0 %v1084, 64
    %v1087 = vpop.permute.xlu0 %1086
    %v1089 = vmul.f32 %v1068, %v1087
    %vm1090 = vcmask 1041408
    %v1091 = vsel %vm1090, %v285, %v400
    %vm1092 = vcmask 1043456
    %v1093 = vsel %vm1092, %v1091, %v516
    %vm1094 = vcmask 1045504
    %v1095 = vsel %vm1094, %v1093, %v632
    %v1096 = vsel %vm1090, %v742, %v857
    %v1097 = vsel %vm1092, %v1096, %v973
    %v1098 = vsel %vm1094, %v1097, %v1089
    %v1100 = vrot.slane %v1089, 6
    %v1102 = vrot.slane %v973, 2
    %v1104 = vrot.slane %v857, 6
    %v1106 = vrot.slane %v742, 2
    %v1109 = vrot.slane %v516, 2
    %v1111 = vrot.slane %v400, 6
    %v1113 = vrot.slane %v285, 2
    %v1115 = vsel %vm1090, %v1100, %v1102
    %v1116 = vsel %vm1092, %v1115, %v1104
    %v1117 = vsel %vm1094, %v1116, %v1106
    %v1118 = vsel %vm1090, %v634, %v1109
    %v1119 = vsel %vm1092, %v1118, %v1111
    %v1120 = vsel %vm1094, %v1119, %v1113
    %1123 = vrot.lane.b32.xlu0 %v1117, 64
    %v1124 = vpop.permute.xlu0 %1123
    %1125 = vrot.lane.b32.xlu0 %v1120, 64
    %v1126 = vpop.permute.xlu0 %1125
    %1131 = vrot.lane.b32.xlu0 %v1095, 64
    %v1132 = vpop.permute.xlu0 %1131
    %1133 = vrot.lane.b32.xlu0 %v1098, 64
    %v1134 = vpop.permute.xlu0 %1133
    %vm1137 = vcmask 261120
    %v1138 = vsel %vm1137, %v1095, %v1117
    %v1139 = vsel %vm1137, %v1098, %v1120
    %v1140 = vsel %vm179, %v1138, %v1124
    %v1141 = vsel %vm179, %v1139, %v1126
    %vm1142 = vcmask 785408
    %v1143 = vsel %vm1142, %v1140, %v1132
    %v1144 = vsel %vm1142, %v1141, %v1134
    %v1145 = vld [vmem:[#allocation2] sm:$0xff]
    %v1146 = vld [vmem:[#allocation2 + $0x8] sm:$0xff]
    %v1147 = vld [vmem:[#allocation2 + $0x10] sm:$0xff]
    %v1148 = vld [vmem:[#allocation2 + $0x18] sm:$0xff]
    %v1149 = vld [vmem:[#allocation2 + $0x20] sm:$0xff]
    %v1150 = vld [vmem:[#allocation2 + $0x28] sm:$0xff]
    %v1151 = vld [vmem:[#allocation2 + $0x30] sm:$0xff]
    %v1152 = vld [vmem:[#allocation2 + $0x38] sm:$0xff]
    %v1153 = vld [vmem:[#allocation2 + $0x40] sm:$0xff]
    %v1154 = vld [vmem:[#allocation2 + $0x48] sm:$0xff]
    %v1155 = vld [vmem:[#allocation2 + $0x50] sm:$0xff]
    %v1156 = vld [vmem:[#allocation2 + $0x58] sm:$0xff]
    %v1157 = vld [vmem:[#allocation2 + $0x60] sm:$0xff]
    %v1158 = vld [vmem:[#allocation2 + $0x68] sm:$0xff]
    %v1159 = vld [vmem:[#allocation2 + $0x70] sm:$0xff]
    %v1160 = vld [vmem:[#allocation2 + $0x78] sm:$0xff]
    %v1161 = vld [vmem:[#allocation2 + $0x80] sm:$0xff]
    %v1162 = vld [vmem:[#allocation2 + $0x88] sm:$0xff]
    %v1163 = vld [vmem:[#allocation2 + $0x90] sm:$0xff]
    %v1164 = vld [vmem:[#allocation2 + $0x98] sm:$0xff]
    %v1165 = vld [vmem:[#allocation2 + $0xa0] sm:$0xff]
    %v1166 = vld [vmem:[#allocation2 + $0xa8] sm:$0xff]
    %v1167 = vld [vmem:[#allocation2 + $0xb0] sm:$0xff]
    %v1168 = vld [vmem:[#allocation2 + $0xb8] sm:$0xff]
    %v1169 = vld [vmem:[#allocation2 + $0xc0] sm:$0xff]
    %v1170 = vld [vmem:[#allocation2 + $0xc8] sm:$0xff]
    %v1171 = vld [vmem:[#allocation2 + $0xd0] sm:$0xff]
    %v1172 = vld [vmem:[#allocation2 + $0xd8] sm:$0xff]
    %v1173 = vld [vmem:[#allocation2 + $0xe0] sm:$0xff]
    %v1174 = vld [vmem:[#allocation2 + $0xe8] sm:$0xff]
    %v1175 = vld [vmem:[#allocation2 + $0xf0] sm:$0xff]
    %v1176 = vld [vmem:[#allocation2 + $0xf8] sm:$0xff]
    %v1177 = vld [vmem:[#allocation5] sm:$0xff]
    %v1178 = vld [vmem:[#allocation5 + $0x8] sm:$0xff]
    %v1179 = vld [vmem:[#allocation5 + $0x10] sm:$0xff]
    %v1180 = vld [vmem:[#allocation5 + $0x18] sm:$0xff]
    %v1181 = vld [vmem:[#allocation5 + $0x20] sm:$0xff]
    %v1182 = vld [vmem:[#allocation5 + $0x28] sm:$0xff]
    %v1183 = vld [vmem:[#allocation5 + $0x30] sm:$0xff]
    %v1184 = vld [vmem:[#allocation5 + $0x38] sm:$0xff]
    %v1185 = vld [vmem:[#allocation5 + $0x40] sm:$0xff]
    %v1186 = vld [vmem:[#allocation5 + $0x48] sm:$0xff]
    %v1187 = vld [vmem:[#allocation5 + $0x50] sm:$0xff]
    %v1188 = vld [vmem:[#allocation5 + $0x58] sm:$0xff]
    %v1189 = vld [vmem:[#allocation5 + $0x60] sm:$0xff]
    %v1190 = vld [vmem:[#allocation5 + $0x68] sm:$0xff]
    %v1191 = vld [vmem:[#allocation5 + $0x70] sm:$0xff]
    %v1192 = vld [vmem:[#allocation5 + $0x78] sm:$0xff]
    %v1193 = vld [vmem:[%s6] sm:$0x3]
    %v1195 = vlaneseq
    %v1196 = vshrl.u32 %v1195, 7
    %v1197 = vsub.s32 0, %v1196
    %v1198 = vrot.slane %v1193, %v1197
    %v1199 = vlaneseq
    %v1200 = vshrl.u32 %v1199, 7
    %v1201 = vsub.s32 1, %v1200
    %v1202 = vrot.slane %v1193, %v1201
    %1205 = vmatprep.subr.mxu0 %v1146
    %1206 = vmatpush1.msra.mxu0 %v1145
    %1207 = vmatprep.subr.mxu0 %v1148
    %1208 = vmatpush1.msra.mxu0 %v1147
    %1209 = vmatprep.subr.mxu0 %v1150
    %1210 = vmatpush1.msra.mxu0 %v1149
    %1211 = vmatprep.subr.mxu0 %v1152
    %1212 = vmatpush1.msra.mxu0 %v1151
    %1213 = vmatprep.subr.mxu0 %v1154
    %1214 = vmatpush1.msra.mxu0 %v1153
    %1215 = vmatprep.subr.mxu0 %v1156
    %1216 = vmatpush1.msra.mxu0 %v1155
    %1217 = vmatprep.subr.mxu0 %v1158
    %1218 = vmatpush1.msra.mxu0 %v1157
    %1219 = vmatprep.subr.mxu0 %v1160
    %1220 = vmatpush1.msra.mxu0 %v1159
    %1221 = vmatprep.subr.mxu0 %v1162
    %1222 = vmatpush1.msra.mxu0 %v1161
    %1223 = vmatprep.subr.mxu0 %v1164
    %1224 = vmatpush1.msra.mxu0 %v1163
    %1225 = vmatprep.subr.mxu0 %v1166
    %1226 = vmatpush1.msra.mxu0 %v1165
    %1227 = vmatprep.subr.mxu0 %v1168
    %1228 = vmatpush1.msra.mxu0 %v1167
    %1229 = vmatprep.subr.mxu0 %v1170
    %1230 = vmatpush1.msra.mxu0 %v1169
    %1231 = vmatprep.subr.mxu0 %v1172
    %1232 = vmatpush1.msra.mxu0 %v1171
    %1233 = vmatprep.subr.mxu0 %v1174
    %1234 = vmatpush1.msra.mxu0 %v1173
    %1235 = vmatprep.subr.mxu0 %v1176
    %1236 = vmatpush1.msra.mxu0 %v1175
    %1237 = vmatprep.subr.mxu0 0.0
    %1238 = vmatpush1.msra.mxu0 0.0
    %1239 = vmatprep.subr.mxu0 0.0
    %1240 = vmatpush1.msra.mxu0 0.0
    %1241 = vmatprep.subr.mxu0 0.0
    %1242 = vmatpush1.msra.mxu0 0.0
    %1243 = vmatprep.subr.mxu0 0.0
    %1244 = vmatpush1.msra.mxu0 0.0
    %1245 = vmatprep.subr.mxu0 0.0
    %1246 = vmatpush1.msra.mxu0 0.0
    %1247 = vmatprep.subr.mxu0 0.0
    %1248 = vmatpush1.msra.mxu0 0.0
    %1249 = vmatprep.subr.mxu0 0.0
    %1250 = vmatpush1.msra.mxu0 0.0
    %1251 = vmatprep.subr.mxu0 0.0
    %1252 = vmatpush1.msra.mxu0 0.0
    %1253 = vmatprep.subr.mxu0 0.0
    %1254 = vmatpush1.msra.mxu0 0.0
    %1255 = vmatprep.subr.mxu0 0.0
    %1256 = vmatpush1.msra.mxu0 0.0
    %1257 = vmatprep.subr.mxu0 0.0
    %1258 = vmatpush1.msra.mxu0 0.0
    %1259 = vmatprep.subr.mxu0 0.0
    %1260 = vmatpush1.msra.mxu0 0.0
    %1261 = vmatprep.subr.mxu0 0.0
    %1262 = vmatpush1.msra.mxu0 0.0
    %1263 = vmatprep.subr.mxu0 0.0
    %1264 = vmatpush1.msra.mxu0 0.0
    %1265 = vmatprep.subr.mxu0 0.0
    %1266 = vmatpush1.msra.mxu0 0.0
    %1267 = vmatprep.subr.mxu0 0.0
    %1268 = vmatpush1.msra.mxu0 0.0
    %1269 = vmatprep.mubr.f32.mxu0 0.0
    %1270 = vmatmul.mubr.f32.gmra.mrb[0].mxu0 %v1143
    %v1271 = vpop.f32.mrb[0].mxu0
    %v1272 = vadd.f32 %v1198, %v1271
    %v1273 = vpop.f32.mrb[0].mxu0
    %v1274 = vadd.f32 %v1202, %v1273
    %1275 = vmatprep.mubr.f32.mxu0 0.0
    %1276 = vmatmul.mubr.f32.gmra.mrb[0].mxu0 %v1144
    %v1277 = vpop.f32.mrb[0].mxu0
    %v1278 = vadd.f32 %v1198, %v1277
    %v1279 = vpop.f32.mrb[0].mxu0
    %v1280 = vadd.f32 %v1202, %v1279
    %1281 = vdwg.mxu0
    %1282 = vmatprep.subr.mxu0 %v1178
    %1283 = vmatpush1.msra.mxu0 %v1177
    %1284 = vmatprep.subr.mxu0 %v1180
    %1285 = vmatpush1.msra.mxu0 %v1179
    %1286 = vmatprep.subr.mxu0 %v1182
    %1287 = vmatpush1.msra.mxu0 %v1181
    %1288 = vmatprep.subr.mxu0 %v1184
    %1289 = vmatpush1.msra.mxu0 %v1183
    %1290 = vmatprep.subr.mxu0 %v1186
    %1291 = vmatpush1.msra.mxu0 %v1185
    %1292 = vmatprep.subr.mxu0 %v1188
    %1293 = vmatpush1.msra.mxu0 %v1187
    %1294 = vmatprep.subr.mxu0 %v1190
    %1295 = vmatpush1.msra.mxu0 %v1189
    %1296 = vmatprep.subr.mxu0 %v1192
    %1297 = vmatpush1.msra.mxu0 %v1191
    %1298 = vmatprep.subr.mxu0 0.0
    %1299 = vmatpush1.msra.mxu0 0.0
    %1300 = vmatprep.subr.mxu0 0.0
    %1301 = vmatpush1.msra.mxu0 0.0
    %1302 = vmatprep.subr.mxu0 0.0
    %1303 = vmatpush1.msra.mxu0 0.0
    %1304 = vmatprep.subr.mxu0 0.0
    %1305 = vmatpush1.msra.mxu0 0.0
    %1306 = vmatprep.subr.mxu0 0.0
    %1307 = vmatpush1.msra.mxu0 0.0
    %1308 = vmatprep.subr.mxu0 0.0
    %1309 = vmatpush1.msra.mxu0 0.0
    %1310 = vmatprep.subr.mxu0 0.0
    %1311 = vmatpush1.msra.mxu0 0.0
    %1312 = vmatprep.subr.mxu0 0.0
    %1313 = vmatpush1.msra.mxu0 0.0
    %1314 = vmatprep.subr.mxu0 0.0
    %1315 = vmatpush1.msra.mxu0 0.0
    %1316 = vmatprep.subr.mxu0 0.0
    %1317 = vmatpush1.msra.mxu0 0.0
    %1318 = vmatprep.subr.mxu0 0.0
    %1319 = vmatpush1.msra.mxu0 0.0
    %1320 = vmatprep.subr.mxu0 0.0
    %1321 = vmatpush1.msra.mxu0 0.0
    %1322 = vmatprep.subr.mxu0 0.0
    %1323 = vmatpush1.msra.mxu0 0.0
    %1324 = vmatprep.subr.mxu0 0.0
    %1325 = vmatpush1.msra.mxu0 0.0
    %1326 = vmatprep.subr.mxu0 0.0
    %1327 = vmatpush1.msra.mxu0 0.0
    %1328 = vmatprep.subr.mxu0 0.0
    %1329 = vmatpush1.msra.mxu0 0.0
    %1330 = vmatprep.subr.mxu0 0.0
    %1331 = vmatpush1.msra.mxu0 0.0
    %1332 = vmatprep.subr.mxu0 0.0
    %1333 = vmatpush1.msra.mxu0 0.0
    %1334 = vmatprep.subr.mxu0 0.0
    %1335 = vmatpush1.msra.mxu0 0.0
    %1336 = vmatprep.subr.mxu0 0.0
    %1337 = vmatpush1.msra.mxu0 0.0
    %1338 = vmatprep.subr.mxu0 0.0
    %1339 = vmatpush1.msra.mxu0 0.0
    %1340 = vmatprep.subr.mxu0 0.0
    %1341 = vmatpush1.msra.mxu0 0.0
    %1342 = vmatprep.subr.mxu0 0.0
    %1343 = vmatpush1.msra.mxu0 0.0
    %1344 = vmatprep.subr.mxu0 0.0
    %1345 = vmatpush1.msra.mxu0 0.0
    %1346 = vmatprep.mubr.f32.mxu0 0.0
    %1347 = vmatmul.mubr.f32.gmra.mrb[0].mxu0 %v181
    %v1348 = vpop.f32.mrb[0].mxu0
    %v1349 = vadd.f32 0.0, %v1348
    %v1350 = vpop.f32.mrb[0].mxu0
    %v1351 = vadd.f32 0.0, %v1350
    %1352 = vdwg.mxu0
    %v1353 = vadd.f32 %v1272, %v1349
    %v1354 = vadd.f32 %v1274, %v1351
    %v1355 = vxor.u32 %v1353, 2147483648
    %v1356 = vxor.u32 %v1354, 2147483648
    %v1357 = vmul.f32 %v1355, 1.442695
    %v1358 = vpow.pop %v1357
    %v1359 = vmul.f32 %v1356, 1.442695
    %v1360 = vpow.pop %v1359
    %v1361 = vadd.f32 %v1358, 1.0
    %v1362 = vadd.f32 %v1360, 1.0
    %v1363 = vrcp.pop %v1361
    %v1364 = vmul.f32 1.0, %v1363
    %v1365 = vrcp.pop %v1362
    %v1366 = vmul.f32 1.0, %v1365
    %v1367 = vtanh.pop %v1354
    %v1368 = vmul.f32 %v1364, 0.0
    %1370 = vrot.lane.b32.xlu0 %v1367, 64
    %v1371 = vpop.permute.xlu0 %1370
    %v1373 = vmul.f32 %v1364, %v1371
    %1375 = vrot.lane.b32.xlu0 %v1373, 64
    %v1376 = vpop.permute.xlu0 %1375
    %v1378 = vadd.f32 %v1368, %v1376
    %v1379 = vtanh.pop %v1378
    %1381 = vrot.lane.b32.xlu0 %v1379, 64
    %v1382 = vpop.permute.xlu0 %1381
    %v1384 = vmul.f32 %v1366, %v1382
    %v1386 = vsel %vm179, %v1384, 0
    %1388 = vmatprep.subr.mxu0 %v1178
    %1389 = vmatpush1.msra.mxu0 %v1177
    %1390 = vmatprep.subr.mxu0 %v1180
    %1391 = vmatpush1.msra.mxu0 %v1179
    %1392 = vmatprep.subr.mxu0 %v1182
    %1393 = vmatpush1.msra.mxu0 %v1181
    %1394 = vmatprep.subr.mxu0 %v1184
    %1395 = vmatpush1.msra.mxu0 %v1183
    %1396 = vmatprep.subr.mxu0 %v1186
    %1397 = vmatpush1.msra.mxu0 %v1185
    %1398 = vmatprep.subr.mxu0 %v1188
    %1399 = vmatpush1.msra.mxu0 %v1187
    %1400 = vmatprep.subr.mxu0 %v1190
    %1401 = vmatpush1.msra.mxu0 %v1189
    %1402 = vmatprep.subr.mxu0 %v1192
    %1403 = vmatpush1.msra.mxu0 %v1191
    %1404 = vmatprep.subr.mxu0 0.0
    %1405 = vmatpush1.msra.mxu0 0.0
    %1406 = vmatprep.subr.mxu0 0.0
    %1407 = vmatpush1.msra.mxu0 0.0
    %1408 = vmatprep.subr.mxu0 0.0
    %1409 = vmatpush1.msra.mxu0 0.0
    %1410 = vmatprep.subr.mxu0 0.0
    %1411 = vmatpush1.msra.mxu0 0.0
    %1412 = vmatprep.subr.mxu0 0.0
    %1413 = vmatpush1.msra.mxu0 0.0
    %1414 = vmatprep.subr.mxu0 0.0
    %1415 = vmatpush1.msra.mxu0 0.0
    %1416 = vmatprep.subr.mxu0 0.0
    %1417 = vmatpush1.msra.mxu0 0.0
    %1418 = vmatprep.subr.mxu0 0.0
    %1419 = vmatpush1.msra.mxu0 0.0
    %1420 = vmatprep.subr.mxu0 0.0
    %1421 = vmatpush1.msra.mxu0 0.0
    %1422 = vmatprep.subr.mxu0 0.0
    %1423 = vmatpush1.msra.mxu0 0.0
    %1424 = vmatprep.subr.mxu0 0.0
    %1425 = vmatpush1.msra.mxu0 0.0
    %1426 = vmatprep.subr.mxu0 0.0
    %1427 = vmatpush1.msra.mxu0 0.0
    %1428 = vmatprep.subr.mxu0 0.0
    %1429 = vmatpush1.msra.mxu0 0.0
    %1430 = vmatprep.subr.mxu0 0.0
    %1431 = vmatpush1.msra.mxu0 0.0
    %1432 = vmatprep.subr.mxu0 0.0
    %1433 = vmatpush1.msra.mxu0 0.0
    %1434 = vmatprep.subr.mxu0 0.0
    %1435 = vmatpush1.msra.mxu0 0.0
    %1436 = vmatprep.subr.mxu0 0.0
    %1437 = vmatpush1.msra.mxu0 0.0
    %1438 = vmatprep.subr.mxu0 0.0
    %1439 = vmatpush1.msra.mxu0 0.0
    %1440 = vmatprep.subr.mxu0 0.0
    %1441 = vmatpush1.msra.mxu0 0.0
    %1442 = vmatprep.subr.mxu0 0.0
    %1443 = vmatpush1.msra.mxu0 0.0
    %1444 = vmatprep.subr.mxu0 0.0
    %1445 = vmatpush1.msra.mxu0 0.0
    %1446 = vmatprep.subr.mxu0 0.0
    %1447 = vmatpush1.msra.mxu0 0.0
    %1448 = vmatprep.subr.mxu0 0.0
    %1449 = vmatpush1.msra.mxu0 0.0
    %1450 = vmatprep.subr.mxu0 0.0
    %1451 = vmatpush1.msra.mxu0 0.0
    %1452 = vmatprep.mubr.f32.mxu0 0.0
    %1453 = vmatmul.mubr.f32.gmra.mrb[0].mxu0 %v1386
    %v1454 = vpop.f32.mrb[0].mxu0
    %v1455 = vadd.f32 0.0, %v1454
    %v1456 = vpop.f32.mrb[0].mxu0
    %v1457 = vadd.f32 0.0, %v1456
    %1458 = vdwg.mxu0
    %v1461 = vrot.slane %v1455, 6
    %v1462 = vrot.slane %v1457, 6
    %v1465 = vadd.f32 %v1272, %v1461
    %v1466 = vadd.f32 %v1274, %v1462
    %v1467 = vxor.u32 %v1465, 2147483648
    %v1468 = vxor.u32 %v1466, 2147483648
    %v1469 = vmul.f32 %v1467, 1.442695
    %v1470 = vpow.pop %v1469
    %v1471 = vmul.f32 %v1468, 1.442695
    %v1472 = vpow.pop %v1471
    %v1473 = vadd.f32 %v1470, 1.0
    %v1474 = vadd.f32 %v1472, 1.0
    %v1475 = vrcp.pop %v1473
    %v1476 = vmul.f32 1.0, %v1475
    %v1477 = vrcp.pop %v1474
    %v1478 = vmul.f32 1.0, %v1477
    %v1479 = vtanh.pop %v1466
    %v1481 = vrot.slane %v1378, 6
    %v1483 = vmul.f32 %v1476, %v1481
    %1485 = vrot.lane.b32.xlu0 %v1479, 64
    %v1486 = vpop.permute.xlu0 %1485
    %v1488 = vmul.f32 %v1476, %v1486
    %1490 = vrot.lane.b32.xlu0 %v1488, 64
    %v1491 = vpop.permute.xlu0 %1490
    %v1493 = vadd.f32 %v1483, %v1491
    %v1494 = vtanh.pop %v1493
    %1496 = vrot.lane.b32.xlu0 %v1494, 64
    %v1497 = vpop.permute.xlu0 %1496
    %v1499 = vmul.f32 %v1478, %v1497
    %v1501 = vrot.slane %v1499, 2
    %v1502 = vsel %vm179, %v1501, 0
    %1504 = vmatprep.subr.mxu0 %v1178
    %1505 = vmatpush1.msra.mxu0 %v1177
    %1506 = vmatprep.subr.mxu0 %v1180
    %1507 = vmatpush1.msra.mxu0 %v1179
    %1508 = vmatprep.subr.mxu0 %v1182
    %1509 = vmatpush1.msra.mxu0 %v1181
    %1510 = vmatprep.subr.mxu0 %v1184
    %1511 = vmatpush1.msra.mxu0 %v1183
    %1512 = vmatprep.subr.mxu0 %v1186
    %1513 = vmatpush1.msra.mxu0 %v1185
    %1514 = vmatprep.subr.mxu0 %v1188
    %1515 = vmatpush1.msra.mxu0 %v1187
    %1516 = vmatprep.subr.mxu0 %v1190
    %1517 = vmatpush1.msra.mxu0 %v1189
    %1518 = vmatprep.subr.mxu0 %v1192
    %1519 = vmatpush1.msra.mxu0 %v1191
    %1520 = vmatprep.subr.mxu0 0.0
    %1521 = vmatpush1.msra.mxu0 0.0
    %1522 = vmatprep.subr.mxu0 0.0
    %1523 = vmatpush1.msra.mxu0 0.0
    %1524 = vmatprep.subr.mxu0 0.0
    %1525 = vmatpush1.msra.mxu0 0.0
    %1526 = vmatprep.subr.mxu0 0.0
    %1527 = vmatpush1.msra.mxu0 0.0
    %1528 = vmatprep.subr.mxu0 0.0
    %1529 = vmatpush1.msra.mxu0 0.0
    %1530 = vmatprep.subr.mxu0 0.0
    %1531 = vmatpush1.msra.mxu0 0.0
    %1532 = vmatprep.subr.mxu0 0.0
    %1533 = vmatpush1.msra.mxu0 0.0
    %1534 = vmatprep.subr.mxu0 0.0
    %1535 = vmatpush1.msra.mxu0 0.0
    %1536 = vmatprep.subr.mxu0 0.0
    %1537 = vmatpush1.msra.mxu0 0.0
    %1538 = vmatprep.subr.mxu0 0.0
    %1539 = vmatpush1.msra.mxu0 0.0
    %1540 = vmatprep.subr.mxu0 0.0
    %1541 = vmatpush1.msra.mxu0 0.0
    %1542 = vmatprep.subr.mxu0 0.0
    %1543 = vmatpush1.msra.mxu0 0.0
    %1544 = vmatprep.subr.mxu0 0.0
    %1545 = vmatpush1.msra.mxu0 0.0
    %1546 = vmatprep.subr.mxu0 0.0
    %1547 = vmatpush1.msra.mxu0 0.0
    %1548 = vmatprep.subr.mxu0 0.0
    %1549 = vmatpush1.msra.mxu0 0.0
    %1550 = vmatprep.subr.mxu0 0.0
    %1551 = vmatpush1.msra.mxu0 0.0
    %1552 = vmatprep.subr.mxu0 0.0
    %1553 = vmatpush1.msra.mxu0 0.0
    %1554 = vmatprep.subr.mxu0 0.0
    %1555 = vmatpush1.msra.mxu0 0.0
    %1556 = vmatprep.subr.mxu0 0.0
    %1557 = vmatpush1.msra.mxu0 0.0
    %1558 = vmatprep.subr.mxu0 0.0
    %1559 = vmatpush1.msra.mxu0 0.0
    %1560 = vmatprep.subr.mxu0 0.0
    %1561 = vmatpush1.msra.mxu0 0.0
    %1562 = vmatprep.subr.mxu0 0.0
    %1563 = vmatpush1.msra.mxu0 0.0
    %1564 = vmatprep.subr.mxu0 0.0
    %1565 = vmatpush1.msra.mxu0 0.0
    %1566 = vmatprep.subr.mxu0 0.0
    %1567 = vmatpush1.msra.mxu0 0.0
    %1568 = vmatprep.mubr.f32.mxu0 0.0
    %1569 = vmatmul.mubr.f32.gmra.mrb[0].mxu0 %v1502
    %v1570 = vpop.f32.mrb[0].mxu0
    %v1571 = vadd.f32 0.0, %v1570
    %v1572 = vpop.f32.mrb[0].mxu0
    %v1573 = vadd.f32 0.0, %v1572
    %1574 = vdwg.mxu0
    %v1577 = vrot.slane %v1571, 4
    %v1578 = vrot.slane %v1573, 4
    %v1581 = vadd.f32 %v1272, %v1577
    %v1582 = vadd.f32 %v1274, %v1578
    %v1583 = vxor.u32 %v1581, 2147483648
    %v1584 = vxor.u32 %v1582, 2147483648
    %v1585 = vmul.f32 %v1583, 1.442695
    %v1586 = vpow.pop %v1585
    %v1587 = vmul.f32 %v1584, 1.442695
    %v1588 = vpow.pop %v1587
    %v1589 = vadd.f32 %v1586, 1.0
    %v1590 = vadd.f32 %v1588, 1.0
    %v1591 = vrcp.pop %v1589
    %v1592 = vmul.f32 1.0, %v1591
    %v1593 = vrcp.pop %v1590
    %v1594 = vmul.f32 1.0, %v1593
    %v1595 = vtanh.pop %v1582
    %v1597 = vrot.slane %v1493, 6
    %v1599 = vmul.f32 %v1592, %v1597
    %1601 = vrot.lane.b32.xlu0 %v1595, 64
    %v1602 = vpop.permute.xlu0 %1601
    %v1604 = vmul.f32 %v1592, %v1602
    %1606 = vrot.lane.b32.xlu0 %v1604, 64
    %v1607 = vpop.permute.xlu0 %1606
    %v1609 = vadd.f32 %v1599, %v1607
    %v1610 = vtanh.pop %v1609
    %1612 = vrot.lane.b32.xlu0 %v1610, 64
    %v1613 = vpop.permute.xlu0 %1612
    %v1615 = vmul.f32 %v1594, %v1613
    %v1617 = vrot.slane %v1615, 4
    %v1618 = vsel %vm179, %v1617, 0
    %1620 = vmatprep.subr.mxu0 %v1178
    %1621 = vmatpush1.msra.mxu0 %v1177
    %1622 = vmatprep.subr.mxu0 %v1180
    %1623 = vmatpush1.msra.mxu0 %v1179
    %1624 = vmatprep.subr.mxu0 %v1182
    %1625 = vmatpush1.msra.mxu0 %v1181
    %1626 = vmatprep.subr.mxu0 %v1184
    %1627 = vmatpush1.msra.mxu0 %v1183
    %1628 = vmatprep.subr.mxu0 %v1186
    %1629 = vmatpush1.msra.mxu0 %v1185
    %1630 = vmatprep.subr.mxu0 %v1188
    %1631 = vmatpush1.msra.mxu0 %v1187
    %1632 = vmatprep.subr.mxu0 %v1190
    %1633 = vmatpush1.msra.mxu0 %v1189
    %1634 = vmatprep.subr.mxu0 %v1192
    %1635 = vmatpush1.msra.mxu0 %v1191
    %1636 = vmatprep.subr.mxu0 0.0
    %1637 = vmatpush1.msra.mxu0 0.0
    %1638 = vmatprep.subr.mxu0 0.0
    %1639 = vmatpush1.msra.mxu0 0.0
    %1640 = vmatprep.subr.mxu0 0.0
    %1641 = vmatpush1.msra.mxu0 0.0
    %1642 = vmatprep.subr.mxu0 0.0
    %1643 = vmatpush1.msra.mxu0 0.0
    %1644 = vmatprep.subr.mxu0 0.0
    %1645 = vmatpush1.msra.mxu0 0.0
    %1646 = vmatprep.subr.mxu0 0.0
    %1647 = vmatpush1.msra.mxu0 0.0
    %1648 = vmatprep.subr.mxu0 0.0
    %1649 = vmatpush1.msra.mxu0 0.0
    %1650 = vmatprep.subr.mxu0 0.0
    %1651 = vmatpush1.msra.mxu0 0.0
    %1652 = vmatprep.subr.mxu0 0.0
    %1653 = vmatpush1.msra.mxu0 0.0
    %1654 = vmatprep.subr.mxu0 0.0
    %1655 = vmatpush1.msra.mxu0 0.0
    %1656 = vmatprep.subr.mxu0 0.0
    %1657 = vmatpush1.msra.mxu0 0.0
    %1658 = vmatprep.subr.mxu0 0.0
    %1659 = vmatpush1.msra.mxu0 0.0
    %1660 = vmatprep.subr.mxu0 0.0
    %1661 = vmatpush1.msra.mxu0 0.0
    %1662 = vmatprep.subr.mxu0 0.0
    %1663 = vmatpush1.msra.mxu0 0.0
    %1664 = vmatprep.subr.mxu0 0.0
    %1665 = vmatpush1.msra.mxu0 0.0
    %1666 = vmatprep.subr.mxu0 0.0
    %1667 = vmatpush1.msra.mxu0 0.0
    %1668 = vmatprep.subr.mxu0 0.0
    %1669 = vmatpush1.msra.mxu0 0.0
    %1670 = vmatprep.subr.mxu0 0.0
    %1671 = vmatpush1.msra.mxu0 0.0
    %1672 = vmatprep.subr.mxu0 0.0
    %1673 = vmatpush1.msra.mxu0 0.0
    %1674 = vmatprep.subr.mxu0 0.0
    %1675 = vmatpush1.msra.mxu0 0.0
    %1676 = vmatprep.subr.mxu0 0.0
    %1677 = vmatpush1.msra.mxu0 0.0
    %1678 = vmatprep.subr.mxu0 0.0
    %1679 = vmatpush1.msra.mxu0 0.0
    %1680 = vmatprep.subr.mxu0 0.0
    %1681 = vmatpush1.msra.mxu0 0.0
    %1682 = vmatprep.subr.mxu0 0.0
    %1683 = vmatpush1.msra.mxu0 0.0
    %1684 = vmatprep.mubr.f32.mxu0 0.0
    %1685 = vmatmul.mubr.f32.gmra.mrb[0].mxu0 %v1618
    %v1686 = vpop.f32.mrb[0].mxu0
    %v1687 = vadd.f32 0.0, %v1686
    %v1688 = vpop.f32.mrb[0].mxu0
    %v1689 = vadd.f32 0.0, %v1688
    %1690 = vdwg.mxu0
    %v1693 = vrot.slane %v1687, 2
    %v1694 = vrot.slane %v1689, 2
    %v1697 = vadd.f32 %v1272, %v1693
    %v1698 = vadd.f32 %v1274, %v1694
    %v1699 = vxor.u32 %v1697, 2147483648
    %v1700 = vxor.u32 %v1698, 2147483648
    %v1701 = vmul.f32 %v1699, 1.442695
    %v1702 = vpow.pop %v1701
    %v1703 = vmul.f32 %v1700, 1.442695
    %v1704 = vpow.pop %v1703
    %v1705 = vadd.f32 %v1702, 1.0
    %v1706 = vadd.f32 %v1704, 1.0
    %v1707 = vrcp.pop %v1705
    %v1708 = vmul.f32 1.0, %v1707
    %v1709 = vrcp.pop %v1706
    %v1710 = vmul.f32 1.0, %v1709
    %v1711 = vtanh.pop %v1698
    %v1713 = vrot.slane %v1609, 6
    %v1715 = vmul.f32 %v1708, %v1713
    %1717 = vrot.lane.b32.xlu0 %v1711, 64
    %v1718 = vpop.permute.xlu0 %1717
    %v1720 = vmul.f32 %v1708, %v1718
    %1722 = vrot.lane.b32.xlu0 %v1720, 64
    %v1723 = vpop.permute.xlu0 %1722
    %v1725 = vadd.f32 %v1715, %v1723
    %v1726 = vtanh.pop %v1725
    %1728 = vrot.lane.b32.xlu0 %v1726, 64
    %v1729 = vpop.permute.xlu0 %1728
    %v1731 = vmul.f32 %v1710, %v1729
    %v1733 = vrot.slane %v1731, 6
    %v1734 = vsel %vm179, %v1733, 0
    %1736 = vmatprep.subr.mxu0 %v1178
    %1737 = vmatpush1.msra.mxu0 %v1177
    %1738 = vmatprep.subr.mxu0 %v1180
    %1739 = vmatpush1.msra.mxu0 %v1179
    %1740 = vmatprep.subr.mxu0 %v1182
    %1741 = vmatpush1.msra.mxu0 %v1181
    %1742 = vmatprep.subr.mxu0 %v1184
    %1743 = vmatpush1.msra.mxu0 %v1183
    %1744 = vmatprep.subr.mxu0 %v1186
    %1745 = vmatpush1.msra.mxu0 %v1185
    %1746 = vmatprep.subr.mxu0 %v1188
    %1747 = vmatpush1.msra.mxu0 %v1187
    %1748 = vmatprep.subr.mxu0 %v1190
    %1749 = vmatpush1.msra.mxu0 %v1189
    %1750 = vmatprep.subr.mxu0 %v1192
    %1751 = vmatpush1.msra.mxu0 %v1191
    %1752 = vmatprep.subr.mxu0 0.0
    %1753 = vmatpush1.msra.mxu0 0.0
    %1754 = vmatprep.subr.mxu0 0.0
    %1755 = vmatpush1.msra.mxu0 0.0
    %1756 = vmatprep.subr.mxu0 0.0
    %1757 = vmatpush1.msra.mxu0 0.0
    %1758 = vmatprep.subr.mxu0 0.0
    %1759 = vmatpush1.msra.mxu0 0.0
    %1760 = vmatprep.subr.mxu0 0.0
    %1761 = vmatpush1.msra.mxu0 0.0
    %1762 = vmatprep.subr.mxu0 0.0
    %1763 = vmatpush1.msra.mxu0 0.0
    %1764 = vmatprep.subr.mxu0 0.0
    %1765 = vmatpush1.msra.mxu0 0.0
    %1766 = vmatprep.subr.mxu0 0.0
    %1767 = vmatpush1.msra.mxu0 0.0
    %1768 = vmatprep.subr.mxu0 0.0
    %1769 = vmatpush1.msra.mxu0 0.0
    %1770 = vmatprep.subr.mxu0 0.0
    %1771 = vmatpush1.msra.mxu0 0.0
    %1772 = vmatprep.subr.mxu0 0.0
    %1773 = vmatpush1.msra.mxu0 0.0
    %1774 = vmatprep.subr.mxu0 0.0
    %1775 = vmatpush1.msra.mxu0 0.0
    %1776 = vmatprep.subr.mxu0 0.0
    %1777 = vmatpush1.msra.mxu0 0.0
    %1778 = vmatprep.subr.mxu0 0.0
    %1779 = vmatpush1.msra.mxu0 0.0
    %1780 = vmatprep.subr.mxu0 0.0
    %1781 = vmatpush1.msra.mxu0 0.0
    %1782 = vmatprep.subr.mxu0 0.0
    %1783 = vmatpush1.msra.mxu0 0.0
    %1784 = vmatprep.subr.mxu0 0.0
    %1785 = vmatpush1.msra.mxu0 0.0
    %1786 = vmatprep.subr.mxu0 0.0
    %1787 = vmatpush1.msra.mxu0 0.0
    %1788 = vmatprep.subr.mxu0 0.0
    %1789 = vmatpush1.msra.mxu0 0.0
    %1790 = vmatprep.subr.mxu0 0.0
    %1791 = vmatpush1.msra.mxu0 0.0
    %1792 = vmatprep.subr.mxu0 0.0
    %1793 = vmatpush1.msra.mxu0 0.0
    %1794 = vmatprep.subr.mxu0 0.0
    %1795 = vmatpush1.msra.mxu0 0.0
    %1796 = vmatprep.subr.mxu0 0.0
    %1797 = vmatpush1.msra.mxu0 0.0
    %1798 = vmatprep.subr.mxu0 0.0
    %1799 = vmatpush1.msra.mxu0 0.0
    %1800 = vmatprep.mubr.f32.mxu0 0.0
    %1801 = vmatmul.mubr.f32.gmra.mrb[0].mxu0 %v1734
    %v1802 = vpop.f32.mrb[0].mxu0
    %v1803 = vadd.f32 0.0, %v1802
    %v1804 = vpop.f32.mrb[0].mxu0
    %v1805 = vadd.f32 0.0, %v1804
    %1806 = vdwg.mxu0
    %v1807 = vadd.f32 %v1278, %v1803
    %v1808 = vadd.f32 %v1280, %v1805
    %v1809 = vxor.u32 %v1807, 2147483648
    %v1810 = vxor.u32 %v1808, 2147483648
    %v1811 = vmul.f32 %v1809, 1.442695
    %v1812 = vpow.pop %v1811
    %v1813 = vmul.f32 %v1810, 1.442695
    %v1814 = vpow.pop %v1813
    %v1815 = vadd.f32 %v1812, 1.0
    %v1816 = vadd.f32 %v1814, 1.0
    %v1817 = vrcp.pop %v1815
    %v1818 = vmul.f32 1.0, %v1817
    %v1819 = vrcp.pop %v1816
    %v1820 = vmul.f32 1.0, %v1819
    %v1821 = vtanh.pop %v1808
    %v1823 = vrot.slane %v1725, 6
    %v1825 = vmul.f32 %v1818, %v1823
    %1827 = vrot.lane.b32.xlu0 %v1821, 64
    %v1828 = vpop.permute.xlu0 %1827
    %v1830 = vmul.f32 %v1818, %v1828
    %1832 = vrot.lane.b32.xlu0 %v1830, 64
    %v1833 = vpop.permute.xlu0 %1832
    %v1835 = vadd.f32 %v1825, %v1833
    %v1836 = vtanh.pop %v1835
    %1838 = vrot.lane.b32.xlu0 %v1836, 64
    %v1839 = vpop.permute.xlu0 %1838
    %v1841 = vmul.f32 %v1820, %v1839
    %v1843 = vsel %vm179, %v1841, 0
    %1845 = vmatprep.subr.mxu0 %v1178
    %1846 = vmatpush1.msra.mxu0 %v1177
    %1847 = vmatprep.subr.mxu0 %v1180
    %1848 = vmatpush1.msra.mxu0 %v1179
    %1849 = vmatprep.subr.mxu0 %v1182
    %1850 = vmatpush1.msra.mxu0 %v1181
    %1851 = vmatprep.subr.mxu0 %v1184
    %1852 = vmatpush1.msra.mxu0 %v1183
    %1853 = vmatprep.subr.mxu0 %v1186
    %1854 = vmatpush1.msra.mxu0 %v1185
    %1855 = vmatprep.subr.mxu0 %v1188
    %1856 = vmatpush1.msra.mxu0 %v1187
    %1857 = vmatprep.subr.mxu0 %v1190
    %1858 = vmatpush1.msra.mxu0 %v1189
    %1859 = vmatprep.subr.mxu0 %v1192
    %1860 = vmatpush1.msra.mxu0 %v1191
    %1861 = vmatprep.subr.mxu0 0.0
    %1862 = vmatpush1.msra.mxu0 0.0
    %1863 = vmatprep.subr.mxu0 0.0
    %1864 = vmatpush1.msra.mxu0 0.0
    %1865 = vmatprep.subr.mxu0 0.0
    %1866 = vmatpush1.msra.mxu0 0.0
    %1867 = vmatprep.subr.mxu0 0.0
    %1868 = vmatpush1.msra.mxu0 0.0
    %1869 = vmatprep.subr.mxu0 0.0
    %1870 = vmatpush1.msra.mxu0 0.0
    %1871 = vmatprep.subr.mxu0 0.0
    %1872 = vmatpush1.msra.mxu0 0.0
    %1873 = vmatprep.subr.mxu0 0.0
    %1874 = vmatpush1.msra.mxu0 0.0
    %1875 = vmatprep.subr.mxu0 0.0
    %1876 = vmatpush1.msra.mxu0 0.0
    %1877 = vmatprep.subr.mxu0 0.0
    %1878 = vmatpush1.msra.mxu0 0.0
    %1879 = vmatprep.subr.mxu0 0.0
    %1880 = vmatpush1.msra.mxu0 0.0
    %1881 = vmatprep.subr.mxu0 0.0
    %1882 = vmatpush1.msra.mxu0 0.0
    %1883 = vmatprep.subr.mxu0 0.0
    %1884 = vmatpush1.msra.mxu0 0.0
    %1885 = vmatprep.subr.mxu0 0.0
    %1886 = vmatpush1.msra.mxu0 0.0
    %1887 = vmatprep.subr.mxu0 0.0
    %1888 = vmatpush1.msra.mxu0 0.0
    %1889 = vmatprep.subr.mxu0 0.0
    %1890 = vmatpush1.msra.mxu0 0.0
    %1891 = vmatprep.subr.mxu0 0.0
    %1892 = vmatpush1.msra.mxu0 0.0
    %1893 = vmatprep.subr.mxu0 0.0
    %1894 = vmatpush1.msra.mxu0 0.0
    %1895 = vmatprep.subr.mxu0 0.0
    %1896 = vmatpush1.msra.mxu0 0.0
    %1897 = vmatprep.subr.mxu0 0.0
    %1898 = vmatpush1.msra.mxu0 0.0
    %1899 = vmatprep.subr.mxu0 0.0
    %1900 = vmatpush1.msra.mxu0 0.0
    %1901 = vmatprep.subr.mxu0 0.0
    %1902 = vmatpush1.msra.mxu0 0.0
    %1903 = vmatprep.subr.mxu0 0.0
    %1904 = vmatpush1.msra.mxu0 0.0
    %1905 = vmatprep.subr.mxu0 0.0
    %1906 = vmatpush1.msra.mxu0 0.0
    %1907 = vmatprep.subr.mxu0 0.0
    %1908 = vmatpush1.msra.mxu0 0.0
    %1909 = vmatprep.mubr.f32.mxu0 0.0
    %1910 = vmatmul.mubr.f32.gmra.mrb[0].mxu0 %v1843
    %v1911 = vpop.f32.mrb[0].mxu0
    %v1912 = vadd.f32 0.0, %v1911
    %v1913 = vpop.f32.mrb[0].mxu0
    %v1914 = vadd.f32 0.0, %v1913
    %1915 = vdwg.mxu0
    %v1918 = vrot.slane %v1912, 6
    %v1919 = vrot.slane %v1914, 6
    %v1922 = vadd.f32 %v1278, %v1918
    %v1923 = vadd.f32 %v1280, %v1919
    %v1924 = vxor.u32 %v1922, 2147483648
    %v1925 = vxor.u32 %v1923, 2147483648
    %v1926 = vmul.f32 %v1924, 1.442695
    %v1927 = vpow.pop %v1926
    %v1928 = vmul.f32 %v1925, 1.442695
    %v1929 = vpow.pop %v1928
    %v1930 = vadd.f32 %v1927, 1.0
    %v1931 = vadd.f32 %v1929, 1.0
    %v1932 = vrcp.pop %v1930
    %v1933 = vmul.f32 1.0, %v1932
    %v1934 = vrcp.pop %v1931
    %v1935 = vmul.f32 1.0, %v1934
    %v1936 = vtanh.pop %v1923
    %v1938 = vrot.slane %v1835, 6
    %v1940 = vmul.f32 %v1933, %v1938
    %1942 = vrot.lane.b32.xlu0 %v1936, 64
    %v1943 = vpop.permute.xlu0 %1942
    %v1945 = vmul.f32 %v1933, %v1943
    %1947 = vrot.lane.b32.xlu0 %v1945, 64
    %v1948 = vpop.permute.xlu0 %1947
    %v1950 = vadd.f32 %v1940, %v1948
    %v1951 = vtanh.pop %v1950
    %1953 = vrot.lane.b32.xlu0 %v1951, 64
    %v1954 = vpop.permute.xlu0 %1953
    %v1956 = vmul.f32 %v1935, %v1954
    %v1958 = vrot.slane %v1956, 2
    %v1959 = vsel %vm179, %v1958, 0
    %1961 = vmatprep.subr.mxu0 %v1178
    %1962 = vmatpush1.msra.mxu0 %v1177
    %1963 = vmatprep.subr.mxu0 %v1180
    %1964 = vmatpush1.msra.mxu0 %v1179
    %1965 = vmatprep.subr.mxu0 %v1182
    %1966 = vmatpush1.msra.mxu0 %v1181
    %1967 = vmatprep.subr.mxu0 %v1184
    %1968 = vmatpush1.msra.mxu0 %v1183
    %1969 = vmatprep.subr.mxu0 %v1186
    %1970 = vmatpush1.msra.mxu0 %v1185
    %1971 = vmatprep.subr.mxu0 %v1188
    %1972 = vmatpush1.msra.mxu0 %v1187
    %1973 = vmatprep.subr.mxu0 %v1190
    %1974 = vmatpush1.msra.mxu0 %v1189
    %1975 = vmatprep.subr.mxu0 %v1192
    %1976 = vmatpush1.msra.mxu0 %v1191
    %1977 = vmatprep.subr.mxu0 0.0
    %1978 = vmatpush1.msra.mxu0 0.0
    %1979 = vmatprep.subr.mxu0 0.0
    %1980 = vmatpush1.msra.mxu0 0.0
    %1981 = vmatprep.subr.mxu0 0.0
    %1982 = vmatpush1.msra.mxu0 0.0
    %1983 = vmatprep.subr.mxu0 0.0
    %1984 = vmatpush1.msra.mxu0 0.0
    %1985 = vmatprep.subr.mxu0 0.0
    %1986 = vmatpush1.msra.mxu0 0.0
    %1987 = vmatprep.subr.mxu0 0.0
    %1988 = vmatpush1.msra.mxu0 0.0
    %1989 = vmatprep.subr.mxu0 0.0
    %1990 = vmatpush1.msra.mxu0 0.0
    %1991 = vmatprep.subr.mxu0 0.0
    %1992 = vmatpush1.msra.mxu0 0.0
    %1993 = vmatprep.subr.mxu0 0.0
    %1994 = vmatpush1.msra.mxu0 0.0
    %1995 = vmatprep.subr.mxu0 0.0
    %1996 = vmatpush1.msra.mxu0 0.0
    %1997 = vmatprep.subr.mxu0 0.0
    %1998 = vmatpush1.msra.mxu0 0.0
    %1999 = vmatprep.subr.mxu0 0.0
    %2000 = vmatpush1.msra.mxu0 0.0
    %2001 = vmatprep.subr.mxu0 0.0
    %2002 = vmatpush1.msra.mxu0 0.0
    %2003 = vmatprep.subr.mxu0 0.0
    %2004 = vmatpush1.msra.mxu0 0.0
    %2005 = vmatprep.subr.mxu0 0.0
    %2006 = vmatpush1.msra.mxu0 0.0
    %2007 = vmatprep.subr.mxu0 0.0
    %2008 = vmatpush1.msra.mxu0 0.0
    %2009 = vmatprep.subr.mxu0 0.0
    %2010 = vmatpush1.msra.mxu0 0.0
    %2011 = vmatprep.subr.mxu0 0.0
    %2012 = vmatpush1.msra.mxu0 0.0
    %2013 = vmatprep.subr.mxu0 0.0
    %2014 = vmatpush1.msra.mxu0 0.0
    %2015 = vmatprep.subr.mxu0 0.0
    %2016 = vmatpush1.msra.mxu0 0.0
    %2017 = vmatprep.subr.mxu0 0.0
    %2018 = vmatpush1.msra.mxu0 0.0
    %2019 = vmatprep.subr.mxu0 0.0
    %2020 = vmatpush1.msra.mxu0 0.0
    %2021 = vmatprep.subr.mxu0 0.0
    %2022 = vmatpush1.msra.mxu0 0.0
    %2023 = vmatprep.subr.mxu0 0.0
    %2024 = vmatpush1.msra.mxu0 0.0
    %2025 = vmatprep.mubr.f32.mxu0 0.0
    %2026 = vmatmul.mubr.f32.gmra.mrb[0].mxu0 %v1959
    %v2027 = vpop.f32.mrb[0].mxu0
    %v2028 = vadd.f32 0.0, %v2027
    %v2029 = vpop.f32.mrb[0].mxu0
    %v2030 = vadd.f32 0.0, %v2029
    %2031 = vdwg.mxu0
    %v2034 = vrot.slane %v2028, 4
    %v2035 = vrot.slane %v2030, 4
    %v2038 = vadd.f32 %v1278, %v2034
    %v2039 = vadd.f32 %v1280, %v2035
    %v2040 = vxor.u32 %v2038, 2147483648
    %v2041 = vxor.u32 %v2039, 2147483648
    %v2042 = vmul.f32 %v2040, 1.442695
    %v2043 = vpow.pop %v2042
    %v2044 = vmul.f32 %v2041, 1.442695
    %v2045 = vpow.pop %v2044
    %v2046 = vadd.f32 %v2043, 1.0
    %v2047 = vadd.f32 %v2045, 1.0
    %v2048 = vrcp.pop %v2046
    %v2049 = vmul.f32 1.0, %v2048
    %v2050 = vrcp.pop %v2047
    %v2051 = vmul.f32 1.0, %v2050
    %v2052 = vtanh.pop %v2039
    %v2054 = vrot.slane %v1950, 6
    %v2056 = vmul.f32 %v2049, %v2054
    %2058 = vrot.lane.b32.xlu0 %v2052, 64
    %v2059 = vpop.permute.xlu0 %2058
    %v2061 = vmul.f32 %v2049, %v2059
    %2063 = vrot.lane.b32.xlu0 %v2061, 64
    %v2064 = vpop.permute.xlu0 %2063
    %v2066 = vadd.f32 %v2056, %v2064
    %v2067 = vtanh.pop %v2066
    %2069 = vrot.lane.b32.xlu0 %v2067, 64
    %v2070 = vpop.permute.xlu0 %2069
    %v2072 = vmul.f32 %v2051, %v2070
    %v2074 = vrot.slane %v2072, 4
    %v2075 = vsel %vm179, %v2074, 0
    %2077 = vmatprep.subr.mxu0 %v1178
    %2078 = vmatpush1.msra.mxu0 %v1177
    %2079 = vmatprep.subr.mxu0 %v1180
    %2080 = vmatpush1.msra.mxu0 %v1179
    %2081 = vmatprep.subr.mxu0 %v1182
    %2082 = vmatpush1.msra.mxu0 %v1181
    %2083 = vmatprep.subr.mxu0 %v1184
    %2084 = vmatpush1.msra.mxu0 %v1183
    %2085 = vmatprep.subr.mxu0 %v1186
    %2086 = vmatpush1.msra.mxu0 %v1185
    %2087 = vmatprep.subr.mxu0 %v1188
    %2088 = vmatpush1.msra.mxu0 %v1187
    %2089 = vmatprep.subr.mxu0 %v1190
    %2090 = vmatpush1.msra.mxu0 %v1189
    %2091 = vmatprep.subr.mxu0 %v1192
    %2092 = vmatpush1.msra.mxu0 %v1191
    %2093 = vmatprep.subr.mxu0 0.0
    %2094 = vmatpush1.msra.mxu0 0.0
    %2095 = vmatprep.subr.mxu0 0.0
    %2096 = vmatpush1.msra.mxu0 0.0
    %2097 = vmatprep.subr.mxu0 0.0
    %2098 = vmatpush1.msra.mxu0 0.0
    %2099 = vmatprep.subr.mxu0 0.0
    %2100 = vmatpush1.msra.mxu0 0.0
    %2101 = vmatprep.subr.mxu0 0.0
    %2102 = vmatpush1.msra.mxu0 0.0
    %2103 = vmatprep.subr.mxu0 0.0
    %2104 = vmatpush1.msra.mxu0 0.0
    %2105 = vmatprep.subr.mxu0 0.0
    %2106 = vmatpush1.msra.mxu0 0.0
    %2107 = vmatprep.subr.mxu0 0.0
    %2108 = vmatpush1.msra.mxu0 0.0
    %2109 = vmatprep.subr.mxu0 0.0
    %2110 = vmatpush1.msra.mxu0 0.0
    %2111 = vmatprep.subr.mxu0 0.0
    %2112 = vmatpush1.msra.mxu0 0.0
    %2113 = vmatprep.subr.mxu0 0.0
    %2114 = vmatpush1.msra.mxu0 0.0
    %2115 = vmatprep.subr.mxu0 0.0
    %2116 = vmatpush1.msra.mxu0 0.0
    %2117 = vmatprep.subr.mxu0 0.0
    %2118 = vmatpush1.msra.mxu0 0.0
    %2119 = vmatprep.subr.mxu0 0.0
    %2120 = vmatpush1.msra.mxu0 0.0
    %2121 = vmatprep.subr.mxu0 0.0
    %2122 = vmatpush1.msra.mxu0 0.0
    %2123 = vmatprep.subr.mxu0 0.0
    %2124 = vmatpush1.msra.mxu0 0.0
    %2125 = vmatprep.subr.mxu0 0.0
    %2126 = vmatpush1.msra.mxu0 0.0
    %2127 = vmatprep.subr.mxu0 0.0
    %2128 = vmatpush1.msra.mxu0 0.0
    %2129 = vmatprep.subr.mxu0 0.0
    %2130 = vmatpush1.msra.mxu0 0.0
    %2131 = vmatprep.subr.mxu0 0.0
    %2132 = vmatpush1.msra.mxu0 0.0
    %2133 = vmatprep.subr.mxu0 0.0
    %2134 = vmatpush1.msra.mxu0 0.0
    %2135 = vmatprep.subr.mxu0 0.0
    %2136 = vmatpush1.msra.mxu0 0.0
    %2137 = vmatprep.subr.mxu0 0.0
    %2138 = vmatpush1.msra.mxu0 0.0
    %2139 = vmatprep.subr.mxu0 0.0
    %2140 = vmatpush1.msra.mxu0 0.0
    %2141 = vmatprep.mubr.f32.mxu0 0.0
    %2142 = vmatmul.mubr.f32.gmra.mrb[0].mxu0 %v2075
    %v2143 = vpop.f32.mrb[0].mxu0
    %v2144 = vadd.f32 0.0, %v2143
    %v2145 = vpop.f32.mrb[0].mxu0
    %v2146 = vadd.f32 0.0, %v2145
    %2147 = vdwg.mxu0
    %v2150 = vrot.slane %v2144, 2
    %v2151 = vrot.slane %v2146, 2
    %v2154 = vadd.f32 %v1278, %v2150
    %v2155 = vadd.f32 %v1280, %v2151
    %v2156 = vxor.u32 %v2154, 2147483648
    %v2157 = vxor.u32 %v2155, 2147483648
    %v2158 = vmul.f32 %v2156, 1.442695
    %v2159 = vpow.pop %v2158
    %v2160 = vmul.f32 %v2157, 1.442695
    %v2161 = vpow.pop %v2160
    %v2162 = vadd.f32 %v2159, 1.0
    %v2163 = vadd.f32 %v2161, 1.0
    %v2164 = vrcp.pop %v2162
    %v2165 = vmul.f32 1.0, %v2164
    %v2166 = vrcp.pop %v2163
    %v2167 = vmul.f32 1.0, %v2166
    %v2168 = vtanh.pop %v2155
    %v2170 = vrot.slane %v2066, 6
    %v2172 = vmul.f32 %v2165, %v2170
    %2174 = vrot.lane.b32.xlu0 %v2168, 64
    %v2175 = vpop.permute.xlu0 %2174
    %v2177 = vmul.f32 %v2165, %v2175
    %2179 = vrot.lane.b32.xlu0 %v2177, 64
    %v2180 = vpop.permute.xlu0 %2179
    %v2182 = vadd.f32 %v2172, %v2180
    %v2183 = vtanh.pop %v2182
    %2185 = vrot.lane.b32.xlu0 %v2183, 64
    %v2186 = vpop.permute.xlu0 %2185
    %v2188 = vmul.f32 %v2167, %v2186
    %v2189 = vrot.slane %v1384, 2
    %v2191 = vsel %vm1137, %v2188, %v2189
    %v2192 = vld [vmem:[%s7] sm:$0xff]
    %v2193 = vld [vmem:[%s7 + $0x8] sm:$0xff]
    %v2194 = vld [vmem:[%s7 + $0x10] sm:$0xff]
    %v2195 = vld [vmem:[%s7 + $0x18] sm:$0xff]
    %v2196 = vld [vmem:[%s7 + $0x20] sm:$0xff]
    %v2197 = vld [vmem:[%s7 + $0x28] sm:$0xff]
    %v2198 = vld [vmem:[%s7 + $0x30] sm:$0xff]
    %v2199 = vld [vmem:[%s7 + $0x38] sm:$0xff]
    %v2200 = vld [vmem:[%s8] sm:$0x1]
    %v2202 = vlaneseq
    %v2203 = vshrl.u32 %v2202, 7
    %v2204 = vsub.s32 0, %v2203
    %v2205 = vrot.slane %v2200, %v2204
    %v2208 = vrot.slane %v2191, 6
    %v2209 = vsel %vm179, %v2208, 0
    %2211 = vmatprep.subr.mxu0 0.0
    %2212 = vmatpush1.msra.mxu0 %v2192
    %2213 = vmatprep.subr.mxu0 0.0
    %2214 = vmatpush1.msra.mxu0 %v2193
    %2215 = vmatprep.subr.mxu0 0.0
    %2216 = vmatpush1.msra.mxu0 %v2194
    %2217 = vmatprep.subr.mxu0 0.0
    %2218 = vmatpush1.msra.mxu0 %v2195
    %2219 = vmatprep.subr.mxu0 0.0
    %2220 = vmatpush1.msra.mxu0 %v2196
    %2221 = vmatprep.subr.mxu0 0.0
    %2222 = vmatpush1.msra.mxu0 %v2197
    %2223 = vmatprep.subr.mxu0 0.0
    %2224 = vmatpush1.msra.mxu0 %v2198
    %2225 = vmatprep.subr.mxu0 0.0
    %2226 = vmatpush1.msra.mxu0 %v2199
    %2227 = vmatprep.subr.mxu0 0.0
    %2228 = vmatpush1.msra.mxu0 0.0
    %2229 = vmatprep.subr.mxu0 0.0
    %2230 = vmatpush1.msra.mxu0 0.0
    %2231 = vmatprep.subr.mxu0 0.0
    %2232 = vmatpush1.msra.mxu0 0.0
    %2233 = vmatprep.subr.mxu0 0.0
    %2234 = vmatpush1.msra.mxu0 0.0
    %2235 = vmatprep.subr.mxu0 0.0
    %2236 = vmatpush1.msra.mxu0 0.0
    %2237 = vmatprep.subr.mxu0 0.0
    %2238 = vmatpush1.msra.mxu0 0.0
    %2239 = vmatprep.subr.mxu0 0.0
    %2240 = vmatpush1.msra.mxu0 0.0
    %2241 = vmatprep.subr.mxu0 0.0
    %2242 = vmatpush1.msra.mxu0 0.0
    %2243 = vmatprep.subr.mxu0 0.0
    %2244 = vmatpush1.msra.mxu0 0.0
    %2245 = vmatprep.subr.mxu0 0.0
    %2246 = vmatpush1.msra.mxu0 0.0
    %2247 = vmatprep.subr.mxu0 0.0
    %2248 = vmatpush1.msra.mxu0 0.0
    %2249 = vmatprep.subr.mxu0 0.0
    %2250 = vmatpush1.msra.mxu0 0.0
    %2251 = vmatprep.subr.mxu0 0.0
    %2252 = vmatpush1.msra.mxu0 0.0
    %2253 = vmatprep.subr.mxu0 0.0
    %2254 = vmatpush1.msra.mxu0 0.0
    %2255 = vmatprep.subr.mxu0 0.0
    %2256 = vmatpush1.msra.mxu0 0.0
    %2257 = vmatprep.subr.mxu0 0.0
    %2258 = vmatpush1.msra.mxu0 0.0
    %2259 = vmatprep.subr.mxu0 0.0
    %2260 = vmatpush1.msra.mxu0 0.0
    %2261 = vmatprep.subr.mxu0 0.0
    %2262 = vmatpush1.msra.mxu0 0.0
    %2263 = vmatprep.subr.mxu0 0.0
    %2264 = vmatpush1.msra.mxu0 0.0
    %2265 = vmatprep.subr.mxu0 0.0
    %2266 = vmatpush1.msra.mxu0 0.0
    %2267 = vmatprep.subr.mxu0 0.0
    %2268 = vmatpush1.msra.mxu0 0.0
    %2269 = vmatprep.subr.mxu0 0.0
    %2270 = vmatpush1.msra.mxu0 0.0
    %2271 = vmatprep.subr.mxu0 0.0
    %2272 = vmatpush1.msra.mxu0 0.0
    %2273 = vmatprep.subr.mxu0 0.0
    %2274 = vmatpush1.msra.mxu0 0.0
    %2275 = vmatprep.mubr.f32.mxu0 0.0
    %2276 = vmatmul.mubr.f32.gmra.mrb[0].mxu0 %v2209
    %v2277 = vpop.f32.mrb[0].mxu0
    %v2278 = vadd.f32 %v2205, %v2277
    %v2279 = vpop.f32.mrb[0].mxu0
    %2280 = vdwg.mxu0
    %vm2281 = vcmask 25600
    %2282 = vst.msk [vmem:[#allocation7] sm:$0x3] %vm2281, %v2278
    // Predicated region
    $region46: #{lstm_model_forward.1} parent=1 // pred_check
      _
    $region47: #{lstm_model_forward.1} parent=1 // pred_check_branch
      %2284 = sbr.rel (0) target = $region49
    $region48: #{lstm_model_forward.1} parent=1 // pred_region
      %s2286 = ssub.s32 32, 32
      %2287 = vsyncadd [#allocation4], %s2286
      %s2289 = sshll.u32 [#allocation7], 4
      %s2290 = int_to_ptr.vmem [resolvable:$true] %s2289
      %2292 = dma.vmem_to_hbm [thread:$0]  %s2290, 32, %s9, [#allocation4]
    $region49: #{lstm_model_forward.1} parent=1 // pred_fallthru
      _
    // Predicated region
    $region50: #{lstm_model_forward.1} parent=1 // pred_check
      _
    $region51: #{lstm_model_forward.1} parent=1 // pred_check_branch
      %2294 = sbr.rel (0) target = $region53
    $region52: #{lstm_model_forward.1} parent=1 // pred_region
      %2295 = dma.done [#allocation4], 32
    $region53: #{lstm_model_forward.1} parent=1 // pred_fallthru
      _
    %2296 = vsyncpa [#allocation3], 1
    %2297 = vsyncpa [#allocation6], 1
    %2298 = vsyncpa [#allocation4], 1

</llo_original>
